<compile_context>
chip_gen: v6e
topology: v6e:2x2x1
jax: 0.10.0
libtpu: 0.0.40
codegen_flags: <defaults>
</compile_context>

<pallas_src>
import functools

import jax
import jax.numpy as jnp
from jax.experimental import pallas as pl
from jax.experimental.pallas import tpu as pltpu


PADL = 16   # sublane-aligned (bf16 pack = 16) left pad of the staged FPN rows
PADR = 16   # right pad (only the +1 corner tap peeks past the staged rows)


def _pick_row_tile(H, W, max_rows):
    """Largest divisor TR of H with TR*W <= max_rows and TR*W % 16 == 0."""
    for d in sorted((d for d in range(1, H + 1) if H % d == 0), reverse=True):
        if d * W <= max_rows and (d * W) % 16 == 0:
            return d
    return H  # single tile; output block == full dim, no alignment constraint


def _vmem_bytes_estimate(TR, W, Cin, feat, usize, head_pad):
    """Rough per-step VMEM (lane-padded, double-buffered I/O) for the limit."""
    halo, trw = (TR + 2) * W, TR * W
    lane = lambda c: max(c, 128)
    inp = 2 * halo * lane(9 * Cin) * 2
    wgt = 2 * (9 * Cin * lane(feat) + feat * lane(usize)
               + 9 * usize * lane(usize) + usize * lane(head_pad)) * 2
    bias = 2 * 4 * lane(head_pad) * 4
    outb = 2 * trw * head_pad * 2
    scr = (PADL + halo + PADR) * lane(usize) * 2
    inter = (halo * (lane(feat) + lane(usize)) * 4     # f, p f32 accumulators
             + trw * lane(9 * usize) * 2               # stacked taps (bf16)
             + trw * (lane(usize) + head_pad) * 4)     # h, head accumulator
    return inp + wgt + bias + outb + scr + inter


# ----------------------------------------------------------------------------
# Fused kernel: one (batch, row-tile) per grid step, full chain in VMEM.
# ----------------------------------------------------------------------------
def _fused_ssd_kernel(xcol_ref, stem_w_ref, stem_b_ref, fpn_w_ref, fpn_b_ref,
                      rpn1_w_ref, rpn1_b_ref, rpn2_w_ref, rpn2_b_ref,
                      o_ref, pad_ref, *, W, TR):
    TRW = TR * W                 # interior rows produced by this step
    HALO = (TR + 2) * W          # rows recomputed incl. 1-row vertical halo
    t = pl.program_id(1)

    # --- stem: ONE dense (HALO, 9*Cin) x (9*Cin, feat) MXU dot, f32 acc -----
    f = jnp.dot(xcol_ref[...], stem_w_ref[...],
                preferred_element_type=jnp.float32)
    f = jnp.maximum(f + stem_b_ref[...], 0.0).astype(jnp.bfloat16)

    # --- FPN lateral 1x1 (feat -> usize) + ReLU ------------------------------
    p = jnp.dot(f, fpn_w_ref[...], preferred_element_type=jnp.float32)
    p = jnp.maximum(p + fpn_b_ref[...], 0.0).astype(jnp.bfloat16)

    # --- stage p (with its 1-row vertical halo) in the bf16 scratch.
    #     No full-buffer zeroing: only out-of-image halo rows are zeroed,
    #     and only on the first / last row tile. ------------------------------
    pad_ref[pl.ds(PADL, HALO), :] = p
    zero_row = jnp.zeros((W, pad_ref.shape[1]), pad_ref.dtype)

    @pl.when(t == 0)
    def _():  # image row -1 -> zero padding for the RPN conv
        pad_ref[pl.ds(PADL, W), :] = zero_row

    @pl.when(t == pl.num_programs(1) - 1)
    def _():  # image row H -> zero padding for the RPN conv
        pad_ref[pl.ds(PADL + (TR + 1) * W, W), :] = zero_row

    # --- RPN 3x3: in-VMEM tap stacking -> ONE (TRW, 9*usize) x (9*usize, usize)
    #     dot instead of 9 skinny K=usize dots.  Horizontal 'same'-padding is
    #     handled with NaN-safe selects on the bf16 patches (not f32 results).
    col = jax.lax.broadcasted_iota(jnp.int32, (TRW, 1), 0) % W
    mask_l = col != 0           # dw = -1 tap invalid at j == 0
    mask_r = col != (W - 1)     # dw = +1 tap invalid at j == W-1
    taps = []
    for dh in range(3):
        for dw in range(3):
            start = PADL + dh * W + (dw - 1)
            patch = pad_ref[pl.ds(start, TRW), :]
            if dw == 0:
                patch = jnp.where(mask_l, patch, jnp.zeros_like(patch))
            elif dw == 2:
                patch = jnp.where(mask_r, patch, jnp.zeros_like(patch))
            taps.append(patch)
    stacked = jnp.concatenate(taps, axis=1)              # (TRW, 9*usize) bf16
    h = jnp.dot(stacked, rpn1_w_ref[...], preferred_element_type=jnp.float32)
    h = jnp.maximum(h + rpn1_b_ref[...], 0.0).astype(jnp.bfloat16)

    # --- head 1x1 (usize -> head, lane-padded), no ReLU; bf16 lane-dense store
    out = jnp.dot(h, rpn2_w_ref[...], preferred_element_type=jnp.float32)
    o_ref[...] = (out + rpn2_b_ref[...]).astype(o_ref.dtype)


# ----------------------------------------------------------------------------
# Wrapper: layout plumbing (NCHW -> NHWC, stem im2col, row tiles, head pad).
# ----------------------------------------------------------------------------
def cascade_ssd_forward(params, x_nchw, *, num_anchors, num_classes,
                        max_rows_per_tile=2048):
    x = jnp.transpose(x_nchw, (0, 2, 3, 1)).astype(jnp.float32)   # NHWC
    B, H, W, Cin = x.shape
    feat = params["stem_w"].shape[-1]
    usize = params["fpn_w"].shape[-1]
    head_out = num_anchors * (4 + 1 + num_classes)
    head_pad = ((head_out + 127) // 128) * 128
    HW = H * W

    TR = _pick_row_tile(H, W, max_rows_per_tile)
    T = H // TR
    HALO = (TR + 2) * W

    # Wrapper-side im2col of the tiny-channel input: the stem's 3x3 'same'
    # padding is baked in here, so the kernel's stem is one dense dot.
    xp = jnp.pad(x, ((0, 0), (1, 1), (1, 1), (0, 0)))
    taps = [xp[:, dh:dh + H, dw:dw + W, :] for dh in range(3) for dw in range(3)]
    xcol = jnp.stack(taps, axis=3).reshape(B, H, W, 9 * Cin)
    # 1-row vertical halo per row tile (duplicated rows; zeros at image border)
    xcol = jnp.pad(xcol, ((0, 0), (1, 1), (0, 0), (0, 0)))
    xtiles = jnp.stack([xcol[:, t * TR:t * TR + TR + 2] for t in range(T)], axis=1)
    xtiles = xtiles.reshape(B, T, HALO, 9 * Cin).astype(jnp.bfloat16)

    stem_w = params["stem_w"].reshape(9 * Cin, feat).astype(jnp.bfloat16)
    fpn_w = params["fpn_w"].astype(jnp.bfloat16)
    rpn1_w = params["rpn1_w"].reshape(9 * usize, usize).astype(jnp.bfloat16)
    rpn2_w = jnp.zeros((usize, head_pad), jnp.bfloat16)
    rpn2_w = rpn2_w.at[:, :head_out].set(params["rpn2_w"].astype(jnp.bfloat16))

    stem_b = params["stem_b"].reshape(1, feat).astype(jnp.float32)
    fpn_b = params["fpn_b"].reshape(1, usize).astype(jnp.float32)
    rpn1_b = params["rpn1_b"].reshape(1, usize).astype(jnp.float32)
    rpn2_b = jnp.zeros((1, head_pad), jnp.float32)
    rpn2_b = rpn2_b.at[:, :head_out].set(params["rpn2_b"].astype(jnp.float32))

    kernel = functools.partial(_fused_ssd_kernel, W=W, TR=TR)
    est = _vmem_bytes_estimate(TR, W, Cin, feat, usize, head_pad)
    vmem_limit = int(min(max(2 * est, 32 * 1024 * 1024), 64 * 1024 * 1024))

    out = pl.pallas_call(
        kernel,
        out_shape=jax.ShapeDtypeStruct((B, HW, head_pad), jnp.bfloat16),
        grid_spec=pltpu.PrefetchScalarGridSpec(
            num_scalar_prefetch=0,
            grid=(B, T),
            in_specs=[
                pl.BlockSpec((None, None, HALO, 9 * Cin),
                             lambda b, t: (b, t, 0, 0)),                 # xcol
                pl.BlockSpec((9 * Cin, feat), lambda b, t: (0, 0)),      # stem_w
                pl.BlockSpec((1, feat), lambda b, t: (0, 0)),            # stem_b
                pl.BlockSpec((feat, usize), lambda b, t: (0, 0)),        # fpn_w
                pl.BlockSpec((1, usize), lambda b, t: (0, 0)),           # fpn_b
                pl.BlockSpec((9 * usize, usize), lambda b, t: (0, 0)),   # rpn1_w
                pl.BlockSpec((1, usize), lambda b, t: (0, 0)),           # rpn1_b
                pl.BlockSpec((usize, head_pad), lambda b, t: (0, 0)),    # rpn2_w
                pl.BlockSpec((1, head_pad), lambda b, t: (0, 0)),        # rpn2_b
            ],
            out_specs=pl.BlockSpec((None, TR * W, head_pad),
                                   lambda b, t: (b, t, 0)),
            scratch_shapes=[pltpu.VMEM((PADL + HALO + PADR, usize),
                                       jnp.bfloat16)],
        ),
        compiler_params=pltpu.CompilerParams(
            dimension_semantics=("parallel", "parallel"),
            vmem_limit_bytes=vmem_limit,
        ),
    )(xtiles, stem_w, stem_b, fpn_w, fpn_b, rpn1_w, rpn1_b, rpn2_w, rpn2_b)

    # SSD-style per-anchor predictions: (B, H*W*A, 4 box + 1 conf + C cls).
    out = out[:, :, :head_out].astype(jnp.float32)
    return out.reshape(B, HW * num_anchors, 4 + 1 + num_classes)


# ----------------------------------------------------------------------------
# Parameter init (CascadeSSDNet-lite stand-in) and pure-JAX reference.
# ----------------------------------------------------------------------------
def init_params(key, cin, feat, usize, num_anchors, num_classes):
    def glorot(k, shape):
        fan_in = 1
        for s in shape[:-1]:
            fan_in *= s
        return jax.random.normal(k, shape, jnp.float32) / jnp.sqrt(float(fan_in))

    ks = jax.random.split(key, 4)
    head_out = num_anchors * (4 + 1 + num_classes)
    return {
        "stem_w": glorot(ks[0], (3, 3, cin, feat)),
        "stem_b": jnp.zeros((feat,), jnp.float32),
        "fpn_w": glorot(ks[1], (feat, usize)),
        "fpn_b": jnp.zeros((usize,), jnp.float32),
        "rpn1_w": glorot(ks[2], (3, 3, usize, usize)),
        "rpn1_b": jnp.zeros((usize,), jnp.float32),
        "rpn2_w": glorot(ks[3], (usize, head_out)),
        "rpn2_b": jnp.zeros((head_out,), jnp.float32),
    }


def reference_forward(params, x_nchw, num_anchors, num_classes):
    """Pure-JAX reference mirroring the kernel's bf16-operand / f32-acc math."""
    x = jnp.transpose(x_nchw, (0, 2, 3, 1)).astype(jnp.bfloat16)

    def conv3x3(xb, w_kkio, b):
        B, H, W, C = xb.shape
        Cout = w_kkio.shape[-1]
        w9 = w_kkio.reshape(9, C, Cout).astype(jnp.bfloat16)
        xp = jnp.pad(xb, ((0, 0), (1, 1), (1, 1), (0, 0)))
        acc = jnp.zeros((B, H, W, Cout), jnp.float32)
        for k in range(9):
            dh, dw = divmod(k, 3)
            patch = xp[:, dh:dh + H, dw:dw + W, :].astype(jnp.float32)
            acc = acc + jnp.einsum("bhwc,cn->bhwn", patch,
                                   w9[k].astype(jnp.float32))
        return jnp.maximum(acc + b, 0.0)

    def conv1x1(xb, w, b, relu):
        y = jnp.einsum("bhwc,cn->bhwn", xb.astype(jnp.float32),
                       w.astype(jnp.bfloat16).astype(jnp.float32)) + b
        return jnp.maximum(y, 0.0) if relu else y

    f = conv3x3(x, params["stem_w"], params["stem_b"])
    p = conv1x1(f.astype(jnp.bfloat16), params["fpn_w"], params["fpn_b"], True)
    h = conv3x3(p.astype(jnp.bfloat16), params["rpn1_w"], params["rpn1_b"])
    o = conv1x1(h.astype(jnp.bfloat16), params["rpn2_w"], params["rpn2_b"], False)
    B, H, W, _ = o.shape
    return o.reshape(B, H * W * num_anchors, 4 + 1 + num_classes)


if __name__ == "__main__":
    # Small shapes consistent with the module's defaults (num_anchors=6,
    # num_classes = len(classes)); usize shrunk from 256 -> 32 for the test.
    B, Cin, H, W = 2, 4, 16, 16
    feat, usize = 32, 32
    num_anchors, num_classes = 6, 3

    key = jax.random.PRNGKey(0)
    k_x, k_p = jax.random.split(key)
    x = jax.random.normal(k_x, (B, Cin, H, W), jnp.float32)
    params = init_params(k_p, Cin, feat, usize, num_anchors, num_classes)

    # max_rows_per_tile=128 forces T=2 row tiles here so the halo/tiling path
    # is exercised; production default is 2048 rows per step.
    fwd = jax.jit(functools.partial(cascade_ssd_forward,
                                    num_anchors=num_anchors,
                                    num_classes=num_classes,
                                    max_rows_per_tile=128))
    out = jax.block_until_ready(fwd(params, x))

    assert out.shape == (B, H * W * num_anchors, 4 + 1 + num_classes)
    assert bool(jnp.all(jnp.isfinite(out)))

    ref = reference_forward(params, x, num_anchors, num_classes)
    err = float(jnp.max(jnp.abs(out - ref)))
    assert err < 2e-2, f"mismatch vs reference: {err}"   # bf16 output rounding

    print("KERNEL_OK")
</pallas_src>

<mosaic_0001>
module attributes {stable_mosaic.version = 11 : i64} {
  func.func @_fused_ssd_kernel(%arg0: i32, %arg1: i32, %arg2: memref<1x1x160x36xbf16, #tpu.memory_space<vmem>>, %arg3: memref<36x32xbf16, #tpu.memory_space<vmem>>, %arg4: memref<1x32xf32, #tpu.memory_space<vmem>>, %arg5: memref<32x32xbf16, #tpu.memory_space<vmem>>, %arg6: memref<1x32xf32, #tpu.memory_space<vmem>>, %arg7: memref<288x32xbf16, #tpu.memory_space<vmem>>, %arg8: memref<1x32xf32, #tpu.memory_space<vmem>>, %arg9: memref<32x128xbf16, #tpu.memory_space<vmem>>, %arg10: memref<1x128xf32, #tpu.memory_space<vmem>>, %arg11: memref<1x128x128xbf16, #tpu.memory_space<vmem>>, %arg12: memref<192x32xbf16, #tpu.memory_space<vmem>>) attributes {dimension_semantics = [#tpu.dimension_semantics<parallel>, #tpu.dimension_semantics<parallel>], iteration_bounds = array<i64: 2, 2>, scalar_prefetch = 0 : i64, scratch_operands = 1 : i64, tpu.core_type = #tpu.core_type<tc>, window_params = [{transform_indices = @transform_0, window_bounds = array<i64: 1, 1, 160, 36>}, {pipeline_mode = #tpu.pipeline_mode<synchronous>, transform_indices = @transform_1, window_bounds = array<i64: 36, 32>}, {pipeline_mode = #tpu.pipeline_mode<synchronous>, transform_indices = @transform_2, window_bounds = array<i64: 1, 32>}, {pipeline_mode = #tpu.pipeline_mode<synchronous>, transform_indices = @transform_3, window_bounds = array<i64: 32, 32>}, {pipeline_mode = #tpu.pipeline_mode<synchronous>, transform_indices = @transform_4, window_bounds = array<i64: 1, 32>}, {pipeline_mode = #tpu.pipeline_mode<synchronous>, transform_indices = @transform_5, window_bounds = array<i64: 288, 32>}, {pipeline_mode = #tpu.pipeline_mode<synchronous>, transform_indices = @transform_6, window_bounds = array<i64: 1, 32>}, {pipeline_mode = #tpu.pipeline_mode<synchronous>, transform_indices = @transform_7, window_bounds = array<i64: 32, 128>}, {pipeline_mode = #tpu.pipeline_mode<synchronous>, transform_indices = @transform_8, window_bounds = array<i64: 1, 128>}, {transform_indices = @transform_9, window_bounds = array<i64: 1, 128, 128>}]} {
    %c0 = arith.constant 0 : index
    %c0_0 = arith.constant 0 : index
    %c0_1 = arith.constant 0 : index
    %c0_2 = arith.constant 0 : index
    %0 = vector.load %arg2[%c0, %c0_0, %c0_1, %c0_2] : memref<1x1x160x36xbf16, #tpu.memory_space<vmem>>, vector<1x1x160x36xbf16>
    %1 = vector.shape_cast %0 : vector<1x1x160x36xbf16> to vector<160x36xbf16>
    %c0_3 = arith.constant 0 : index
    %c0_4 = arith.constant 0 : index
    %2 = vector.load %arg3[%c0_3, %c0_4] : memref<36x32xbf16, #tpu.memory_space<vmem>>, vector<36x32xbf16>
    %cst = arith.constant dense<0.000000e+00> : vector<160x32xf32>
    %3 = tpu.matmul %1, %2, %cst {dimension_numbers = #tpu.dot_dimension_numbers<[1], [0], [0], [1], [0, 0, 1, 1], [], []>} : vector<160x36xbf16>, vector<36x32xbf16>, vector<160x32xf32> -> vector<160x32xf32>
    %c0_5 = arith.constant 0 : index
    %c0_6 = arith.constant 0 : index
    %4 = vector.load %arg4[%c0_5, %c0_6] : memref<1x32xf32, #tpu.memory_space<vmem>>, vector<1x32xf32>
    %5 = vector.broadcast %4 : vector<1x32xf32> to vector<160x32xf32>
    %6 = arith.addf %3, %5 : vector<160x32xf32>
    %cst_7 = arith.constant 0.000000e+00 : f32
    %7 = vector.broadcast %cst_7 : f32 to vector<160x32xf32>
    %8 = arith.maximumf %6, %7 : vector<160x32xf32>
    %9 = arith.truncf %8 : vector<160x32xf32> to vector<160x32xbf16>
    %c0_8 = arith.constant 0 : index
    %c0_9 = arith.constant 0 : index
    %10 = vector.load %arg5[%c0_8, %c0_9] : memref<32x32xbf16, #tpu.memory_space<vmem>>, vector<32x32xbf16>
    %cst_10 = arith.constant dense<0.000000e+00> : vector<160x32xf32>
    %11 = tpu.matmul %9, %10, %cst_10 {dimension_numbers = #tpu.dot_dimension_numbers<[1], [0], [0], [1], [0, 0, 1, 1], [], []>} : vector<160x32xbf16>, vector<32x32xbf16>, vector<160x32xf32> -> vector<160x32xf32>
    %c0_11 = arith.constant 0 : index
    %c0_12 = arith.constant 0 : index
    %12 = vector.load %arg6[%c0_11, %c0_12] : memref<1x32xf32, #tpu.memory_space<vmem>>, vector<1x32xf32>
    %13 = vector.broadcast %12 : vector<1x32xf32> to vector<160x32xf32>
    %14 = arith.addf %11, %13 : vector<160x32xf32>
    %cst_13 = arith.constant 0.000000e+00 : f32
    %15 = vector.broadcast %cst_13 : f32 to vector<160x32xf32>
    %16 = arith.maximumf %14, %15 : vector<160x32xf32>
    %17 = arith.truncf %16 : vector<160x32xf32> to vector<160x32xbf16>
    %c16 = arith.constant 16 : index
    %c0_14 = arith.constant 0 : index
    %18 = vector.load %arg12[%c16, %c0_14] : memref<192x32xbf16, #tpu.memory_space<vmem>>, vector<160x32xbf16>
    tpu.vector_store %arg12[%c16, %c0_14], %17 {strides = array<i32>} : memref<192x32xbf16, #tpu.memory_space<vmem>>, vector<160x32xbf16>,
    %cst_15 = arith.constant 0.000000e+00 : bf16
    %19 = vector.broadcast %cst_15 : bf16 to vector<16x32xbf16>
    %c0_i32 = arith.constant 0 : i32
    %20 = arith.cmpi eq, %arg1, %c0_i32 : i32
    %21 = arith.extui %20 : i1 to i32
    %c0_i32_16 = arith.constant 0 : i32
    %22 = arith.cmpi ne, %21, %c0_i32_16 : i32
    scf.if %22 {
      %c16_54 = arith.constant 16 : index
      %c0_55 = arith.constant 0 : index
      %98 = vector.load %arg12[%c16_54, %c0_55] : memref<192x32xbf16, #tpu.memory_space<vmem>>, vector<16x32xbf16>
      tpu.vector_store %arg12[%c16_54, %c0_55], %19 {strides = array<i32>} : memref<192x32xbf16, #tpu.memory_space<vmem>>, vector<16x32xbf16>,
    } else {
    }
    %c1_i32 = arith.constant 1 : i32
    %23 = arith.cmpi eq, %arg1, %c1_i32 : i32
    %24 = arith.extui %23 : i1 to i32
    %c0_i32_17 = arith.constant 0 : i32
    %25 = arith.cmpi ne, %24, %c0_i32_17 : i32
    scf.if %25 {
      %c160 = arith.constant 160 : index
      %c0_54 = arith.constant 0 : index
      %98 = vector.load %arg12[%c160, %c0_54] : memref<192x32xbf16, #tpu.memory_space<vmem>>, vector<16x32xbf16>
      tpu.vector_store %arg12[%c160, %c0_54], %19 {strides = array<i32>} : memref<192x32xbf16, #tpu.memory_space<vmem>>, vector<16x32xbf16>,
    } else {
    }
    %26 = tpu.iota {dimensions = array<i32: 0>} : vector<128x1xi32>
    %c16_i32 = arith.constant 16 : i32
    %c0_i32_18 = arith.constant 0 : i32
    %27 = arith.cmpi eq, %c16_i32, %c0_i32_18 : i32
    %c1_i32_19 = arith.constant 1 : i32
    %28 = arith.select %27, %c1_i32_19, %c16_i32 : i32
    %29 = vector.broadcast %28 : i32 to vector<128x1xi32>
    %30 = arith.remsi %26, %29 : vector<128x1xi32>
    %c0_i32_20 = arith.constant 0 : i32
    %31 = vector.broadcast %c0_i32_20 : i32 to vector<128x1xi32>
    %32 = arith.cmpi ne, %30, %31 : vector<128x1xi32>
    %c0_i32_21 = arith.constant 0 : i32
    %33 = vector.broadcast %c0_i32_21 : i32 to vector<128x1xi32>
    %34 = arith.cmpi slt, %30, %33 : vector<128x1xi32>
    %c0_i32_22 = arith.constant 0 : i32
    %35 = arith.cmpi slt, %28, %c0_i32_22 : i32
    %36 = vector.broadcast %35 : i1 to vector<128x1xi1>
    %37 = vector.broadcast %36 : vector<128x1xi1> to vector<128x1xi1>
    %38 = arith.xori %34, %37 : vector<128x1xi1>
    %39 = arith.andi %38, %32 : vector<128x1xi1>
    %40 = vector.broadcast %28 : i32 to vector<128x1xi32>
    %41 = arith.addi %30, %40 : vector<128x1xi32>
    %42 = arith.select %39, %41, %30 : vector<128x1xi1>, vector<128x1xi32>
    %c0_i32_23 = arith.constant 0 : i32
    %43 = vector.broadcast %c0_i32_23 : i32 to vector<128x1xi32>
    %44 = arith.cmpi ne, %42, %43 : vector<128x1xi32>
    %c15_i32 = arith.constant 15 : i32
    %45 = vector.broadcast %c15_i32 : i32 to vector<128x1xi32>
    %46 = arith.cmpi ne, %42, %45 : vector<128x1xi32>
    %c15 = arith.constant 15 : index
    %c0_24 = arith.constant 0 : index
    %47 = vector.load %arg12[%c15, %c0_24] : memref<192x32xbf16, #tpu.memory_space<vmem>>, vector<128x32xbf16>
    %cst_25 = arith.constant 0.000000e+00 : bf16
    %48 = vector.broadcast %cst_25 : bf16 to vector<128x32xbf16>
    %49 = vector.shape_cast %44 : vector<128x1xi1> to vector<128x1xi1>
    %50 = vector.broadcast %49 : vector<128x1xi1> to vector<128x32xi1>
    %51 = arith.select %50, %47, %48 : vector<128x32xi1>, vector<128x32xbf16>
    %c16_26 = arith.constant 16 : index
    %c0_27 = arith.constant 0 : index
    %52 = vector.load %arg12[%c16_26, %c0_27] : memref<192x32xbf16, #tpu.memory_space<vmem>>, vector<128x32xbf16>
    %c17 = arith.constant 17 : index
    %c0_28 = arith.constant 0 : index
    %53 = vector.load %arg12[%c17, %c0_28] : memref<192x32xbf16, #tpu.memory_space<vmem>>, vector<128x32xbf16>
    %cst_29 = arith.constant 0.000000e+00 : bf16
    %54 = vector.broadcast %cst_29 : bf16 to vector<128x32xbf16>
    %55 = vector.shape_cast %46 : vector<128x1xi1> to vector<128x1xi1>
    %56 = vector.broadcast %55 : vector<128x1xi1> to vector<128x32xi1>
    %57 = arith.select %56, %53, %54 : vector<128x32xi1>, vector<128x32xbf16>
    %c31 = arith.constant 31 : index
    %c0_30 = arith.constant 0 : index
    %58 = vector.load %arg12[%c31, %c0_30] : memref<192x32xbf16, #tpu.memory_space<vmem>>, vector<128x32xbf16>
    %cst_31 = arith.constant 0.000000e+00 : bf16
    %59 = vector.broadcast %cst_31 : bf16 to vector<128x32xbf16>
    %60 = vector.shape_cast %44 : vector<128x1xi1> to vector<128x1xi1>
    %61 = vector.broadcast %60 : vector<128x1xi1> to vector<128x32xi1>
    %62 = arith.select %61, %58, %59 : vector<128x32xi1>, vector<128x32xbf16>
    %c32 = arith.constant 32 : index
    %c0_32 = arith.constant 0 : index
    %63 = vector.load %arg12[%c32, %c0_32] : memref<192x32xbf16, #tpu.memory_space<vmem>>, vector<128x32xbf16>
    %c33 = arith.constant 33 : index
    %c0_33 = arith.constant 0 : index
    %64 = vector.load %arg12[%c33, %c0_33] : memref<192x32xbf16, #tpu.memory_space<vmem>>, vector<128x32xbf16>
    %cst_34 = arith.constant 0.000000e+00 : bf16
    %65 = vector.broadcast %cst_34 : bf16 to vector<128x32xbf16>
    %66 = vector.shape_cast %46 : vector<128x1xi1> to vector<128x1xi1>
    %67 = vector.broadcast %66 : vector<128x1xi1> to vector<128x32xi1>
    %68 = arith.select %67, %64, %65 : vector<128x32xi1>, vector<128x32xbf16>
    %c47 = arith.constant 47 : index
    %c0_35 = arith.constant 0 : index
    %69 = vector.load %arg12[%c47, %c0_35] : memref<192x32xbf16, #tpu.memory_space<vmem>>, vector<128x32xbf16>
    %cst_36 = arith.constant 0.000000e+00 : bf16
    %70 = vector.broadcast %cst_36 : bf16 to vector<128x32xbf16>
    %71 = vector.shape_cast %44 : vector<128x1xi1> to vector<128x1xi1>
    %72 = vector.broadcast %71 : vector<128x1xi1> to vector<128x32xi1>
    %73 = arith.select %72, %69, %70 : vector<128x32xi1>, vector<128x32xbf16>
    %c48 = arith.constant 48 : index
    %c0_37 = arith.constant 0 : index
    %74 = vector.load %arg12[%c48, %c0_37] : memref<192x32xbf16, #tpu.memory_space<vmem>>, vector<128x32xbf16>
    %c49 = arith.constant 49 : index
    %c0_38 = arith.constant 0 : index
    %75 = vector.load %arg12[%c49, %c0_38] : memref<192x32xbf16, #tpu.memory_space<vmem>>, vector<128x32xbf16>
    %cst_39 = arith.constant 0.000000e+00 : bf16
    %76 = vector.broadcast %cst_39 : bf16 to vector<128x32xbf16>
    %77 = vector.shape_cast %46 : vector<128x1xi1> to vector<128x1xi1>
    %78 = vector.broadcast %77 : vector<128x1xi1> to vector<128x32xi1>
    %79 = arith.select %78, %75, %76 : vector<128x32xi1>, vector<128x32xbf16>
    %80 = tpu.concatenate %51, %52, %57, %62, %63, %68, %73, %74, %79 in 1 : vector<128x32xbf16>, vector<128x32xbf16>, vector<128x32xbf16>, vector<128x32xbf16>, vector<128x32xbf16>, vector<128x32xbf16>, vector<128x32xbf16>, vector<128x32xbf16>, vector<128x32xbf16> -> vector<128x288xbf16>
    %c0_40 = arith.constant 0 : index
    %c0_41 = arith.constant 0 : index
    %81 = vector.load %arg7[%c0_40, %c0_41] : memref<288x32xbf16, #tpu.memory_space<vmem>>, vector<288x32xbf16>
    %cst_42 = arith.constant dense<0.000000e+00> : vector<128x32xf32>
    %82 = tpu.matmul %80, %81, %cst_42 {dimension_numbers = #tpu.dot_dimension_numbers<[1], [0], [0], [1], [0, 0, 1, 1], [], []>} : vector<128x288xbf16>, vector<288x32xbf16>, vector<128x32xf32> -> vector<128x32xf32>
    %c0_43 = arith.constant 0 : index
    %c0_44 = arith.constant 0 : index
    %83 = vector.load %arg8[%c0_43, %c0_44] : memref<1x32xf32, #tpu.memory_space<vmem>>, vector<1x32xf32>
    %84 = vector.broadcast %83 : vector<1x32xf32> to vector<128x32xf32>
    %85 = arith.addf %82, %84 : vector<128x32xf32>
    %cst_45 = arith.constant 0.000000e+00 : f32
    %86 = vector.broadcast %cst_45 : f32 to vector<128x32xf32>
    %87 = arith.maximumf %85, %86 : vector<128x32xf32>
    %88 = arith.truncf %87 : vector<128x32xf32> to vector<128x32xbf16>
    %c0_46 = arith.constant 0 : index
    %c0_47 = arith.constant 0 : index
    %89 = vector.load %arg9[%c0_46, %c0_47] : memref<32x128xbf16, #tpu.memory_space<vmem>>, vector<32x128xbf16>
    %cst_48 = arith.constant dense<0.000000e+00> : vector<128x128xf32>
    %90 = tpu.matmul %88, %89, %cst_48 {dimension_numbers = #tpu.dot_dimension_numbers<[1], [0], [0], [1], [0, 0, 1, 1], [], []>} : vector<128x32xbf16>, vector<32x128xbf16>, vector<128x128xf32> -> vector<128x128xf32>
    %c0_49 = arith.constant 0 : index
    %c0_50 = arith.constant 0 : index
    %91 = vector.load %arg10[%c0_49, %c0_50] : memref<1x128xf32, #tpu.memory_space<vmem>>, vector<1x128xf32>
    %92 = vector.broadcast %91 : vector<1x128xf32> to vector<128x128xf32>
    %93 = arith.addf %90, %92 : vector<128x128xf32>
    %94 = arith.truncf %93 : vector<128x128xf32> to vector<128x128xbf16>
    %c0_51 = arith.constant 0 : index
    %c0_52 = arith.constant 0 : index
    %c0_53 = arith.constant 0 : index
    %95 = vector.load %arg11[%c0_51, %c0_52, %c0_53] : memref<1x128x128xbf16, #tpu.memory_space<vmem>>, vector<1x128x128xbf16>
    %96 = vector.shape_cast %95 : vector<1x128x128xbf16> to vector<128x128xbf16>
    %97 = vector.shape_cast %94 : vector<128x128xbf16> to vector<1x128x128xbf16>
    tpu.vector_store %arg11[%c0_51, %c0_52, %c0_53], %97 {strides = array<i32>} : memref<1x128x128xbf16, #tpu.memory_space<vmem>>, vector<1x128x128xbf16>,
    return
  }
  func.func @transform_0(%arg0: i32, %arg1: i32) -> (i32, i32, i32, i32) {
    %c0_i32 = arith.constant 0 : i32
    %c0_i32_0 = arith.constant 0 : i32
    %c0_i32_1 = arith.constant 0 : i32
    return %arg0, %arg1, %c0_i32, %c0_i32_0 : i32, i32, i32, i32
  }
  func.func @transform_1(%arg0: i32, %arg1: i32) -> (i32, i32) {
    %c0_i32 = arith.constant 0 : i32
    %c0_i32_0 = arith.constant 0 : i32
    %c0_i32_1 = arith.constant 0 : i32
    return %c0_i32, %c0_i32_0 : i32, i32
  }
  func.func @transform_2(%arg0: i32, %arg1: i32) -> (i32, i32) {
    %c0_i32 = arith.constant 0 : i32
    %c0_i32_0 = arith.constant 0 : i32
    %c0_i32_1 = arith.constant 0 : i32
    return %c0_i32, %c0_i32_0 : i32, i32
  }
  func.func @transform_3(%arg0: i32, %arg1: i32) -> (i32, i32) {
    %c0_i32 = arith.constant 0 : i32
    %c0_i32_0 = arith.constant 0 : i32
    %c0_i32_1 = arith.constant 0 : i32
    return %c0_i32, %c0_i32_0 : i32, i32
  }
  func.func @transform_4(%arg0: i32, %arg1: i32) -> (i32, i32) {
    %c0_i32 = arith.constant 0 : i32
    %c0_i32_0 = arith.constant 0 : i32
    %c0_i32_1 = arith.constant 0 : i32
    return %c0_i32, %c0_i32_0 : i32, i32
  }
  func.func @transform_5(%arg0: i32, %arg1: i32) -> (i32, i32) {
    %c0_i32 = arith.constant 0 : i32
    %c0_i32_0 = arith.constant 0 : i32
    %c0_i32_1 = arith.constant 0 : i32
    return %c0_i32, %c0_i32_0 : i32, i32
  }
  func.func @transform_6(%arg0: i32, %arg1: i32) -> (i32, i32) {
    %c0_i32 = arith.constant 0 : i32
    %c0_i32_0 = arith.constant 0 : i32
    %c0_i32_1 = arith.constant 0 : i32
    return %c0_i32, %c0_i32_0 : i32, i32
  }
  func.func @transform_7(%arg0: i32, %arg1: i32) -> (i32, i32) {
    %c0_i32 = arith.constant 0 : i32
    %c0_i32_0 = arith.constant 0 : i32
    %c0_i32_1 = arith.constant 0 : i32
    return %c0_i32, %c0_i32_0 : i32, i32
  }
  func.func @transform_8(%arg0: i32, %arg1: i32) -> (i32, i32) {
    %c0_i32 = arith.constant 0 : i32
    %c0_i32_0 = arith.constant 0 : i32
    %c0_i32_1 = arith.constant 0 : i32
    return %c0_i32, %c0_i32_0 : i32, i32
  }
  func.func @transform_9(%arg0: i32, %arg1: i32) -> (i32, i32, i32) {
    %c0_i32 = arith.constant 0 : i32
    %c0_i32_0 = arith.constant 0 : i32
    return %arg0, %arg1, %c0_i32 : i32, i32, i32
  }
}

</mosaic_0001>

<llo_original>
// kernel: cascade_ssd_forward.1
$region0: #{cascade_ssd_forward.1}
  #allocation0 [shape = 'u32[]', space=smem, size = 0x4, offset = 0x4, fixed_abs, tag = 'smem constant byte address 0x4 - core index']
  #allocation1 [shape = 'u32[144,128]{1,0:T(1,128)}', space=vmem, size = 0x12000, scoped, tag = 'internal scratch']
  #allocation2 [shape = 'bf16[192,32]{1,0:T(8,128)(2,1)}', space=vmem, size = 0xc000, scoped, tag = 'scratch operand']
  %s0 = inlined_call_operand.vmem [shape: bf16[2,2,160,36], index: 0, kind: input, shape index: {}]
  %s1 = inlined_call_operand.vmem [shape: bf16[36,32], index: 1, kind: input, shape index: {}]
  %s2 = inlined_call_operand.vmem [shape: f32[1,32], index: 2, kind: input, shape index: {}]
  %s3 = inlined_call_operand.vmem [shape: bf16[32,32], index: 3, kind: input, shape index: {}]
  %s4 = inlined_call_operand.vmem [shape: f32[1,32], index: 4, kind: input, shape index: {}]
  %s5 = inlined_call_operand.vmem [shape: bf16[288,32], index: 5, kind: input, shape index: {}]
  %s6 = inlined_call_operand.vmem [shape: f32[1,32], index: 6, kind: input, shape index: {}]
  %s7 = inlined_call_operand.vmem [shape: bf16[32,128], index: 7, kind: input, shape index: {}]
  %s8 = inlined_call_operand.vmem [shape: f32[1,128], index: 8, kind: input, shape index: {}]
  %s9 = inlined_call_operand.vmem [shape: bf16[2,256,128], index: 9, kind: output, shape index: {}]
  %s10 = sld [smem:[#allocation0]]
  $region77: #{cascade_ssd_forward.1} parent=0
    _
  %s12 = ssub.s32 1, %s10
  %s13 = scalar_select 0, %s12, %s10
  loop: start=0, step=1, limit=6
  $region2: #{cascade_ssd_forward.1} parent=0 // loop_pre_header
    _
  $region3: #{cascade_ssd_forward.1} parent=0 // loop_header
    %s15 = sphi 0, %s19
    %p16 = scmp.ge.s32.totalorder %s15, 6
    %s22 = sphi 0, %s34
    %s23 = sphi 0, %s30
    %s24 = sphi 0, %s22
    %s25 = sphi 0, %s23
    %s26 = sphi 0, %s24
    %s27 = sphi 0, %s25
    %s39 = sphi 0, %s41
    %s42 = sphi 0, %s39
    %s43 = sphi 0, %s42
    %s59 = sphi 0, %s43
    %s63 = sphi 0, %s63
    %s65 = sphi 0, %s63
    %s66 = sphi 0, %s65
    %s80 = sphi 0, %s66
    %s84 = sphi 0, %s84
    %s86 = sphi 0, %s84
    %s87 = sphi 0, %s86
    %s101 = sphi 0, %s87
    %s105 = sphi 0, %s105
    %s107 = sphi 0, %s105
    %s108 = sphi 0, %s107
    %s122 = sphi 0, %s108
    %s126 = sphi 0, %s126
    %s128 = sphi 0, %s126
    %s129 = sphi 0, %s128
    %s143 = sphi 0, %s129
    %s147 = sphi 0, %s147
    %s149 = sphi 0, %s147
    %s150 = sphi 0, %s149
    %s164 = sphi 0, %s150
    %s168 = sphi 0, %s168
    %s170 = sphi 0, %s168
    %s171 = sphi 0, %s170
    %s185 = sphi 0, %s171
    %s189 = sphi 0, %s189
    %s191 = sphi 0, %s189
    %s192 = sphi 0, %s191
    %s206 = sphi 0, %s192
    %s210 = sphi 0, %s210
    %s212 = sphi 0, %s210
    %s213 = sphi 0, %s212
    %s227 = sphi 0, %s213
    %s235 = sphi 0, %s237
    %s238 = sphi 0, %s235
    %s239 = sphi 0, %s238
    %s255 = sphi 0, %s239
  $region4: #{cascade_ssd_forward.1} parent=0 // loop_header_branch
    %18 = sbr.rel (%p16) target = $region8
  $region5: #{cascade_ssd_forward.1} parent=0 // loop_body
    %s20 = ssub.s32 %s15, 1
    %s21 = ssub.s32 %s15, 2
    %s28 = sadd.s32 1, %s23
    %p29 = scmp.ge.s32.totalorder %s28, 2
    %s30 = scalar_select %p29, 0, %s28
    %s31 = sadd.s32 1, %s22
    %s32 = scalar_select %p29, %s31, %s22
    %p33 = scmp.ge.s32.totalorder %s32, 2
    %s34 = scalar_select %p33, 0, %s32
    %s35 = ssub.s32 %s22, %s34
    %s36 = ssub.s32 %s23, %s30
    %s37 = sor.u32 %s35, %s36
    %p38 = scmp.eq.s32.totalorder %s37, 0
    %s40 = sadd.s32 %s39, 1
    %s41 = scalar_select %p38, %s39, %s40
    %p44 = pneg %p38
    %p45 = scmp.eq.s32.totalorder %s15, 3
    %p46 = por %p44, %p45
    %p47 = scmp.ne.s32.totalorder %s39, %s42
    %p48 = scmp.eq.s32.totalorder %s15, 0
    %p49 = por %p47, %p48
    %p50 = scmp.ne.s32.totalorder %s39, %s42
    %p51 = scmp.eq.s32.totalorder %s20, 3
    %p52 = por %p50, %p51
    %p53 = scmp.ne.s32.totalorder %s42, %s43
    %p54 = scmp.eq.s32.totalorder %s20, 0
    %p55 = por %p53, %p54
    %p56 = scmp.ne.s32.totalorder %s42, %s43
    %p57 = scmp.eq.s32.totalorder %s21, 3
    %p58 = por %p56, %p57
    %p60 = scmp.ne.s32.totalorder %s43, %s59
    %p61 = scmp.eq.s32.totalorder %s21, 0
    %p62 = por %p60, %p61
    %s64 = sadd.s32 %s63, 1
    %p67 = scmp.eq.s32.totalorder %s15, 3
    %p68 = scmp.ne.s32.totalorder %s63, %s65
    %p69 = scmp.eq.s32.totalorder %s15, 0
    %p70 = por %p68, %p69
    %p71 = scmp.ne.s32.totalorder %s63, %s65
    %p72 = scmp.eq.s32.totalorder %s20, 3
    %p73 = por %p71, %p72
    %p74 = scmp.ne.s32.totalorder %s65, %s66
    %p75 = scmp.eq.s32.totalorder %s20, 0
    %p76 = por %p74, %p75
    %p77 = scmp.ne.s32.totalorder %s65, %s66
    %p78 = scmp.eq.s32.totalorder %s21, 3
    %p79 = por %p77, %p78
    %p81 = scmp.ne.s32.totalorder %s66, %s80
    %p82 = scmp.eq.s32.totalorder %s21, 0
    %p83 = por %p81, %p82
    %s85 = sadd.s32 %s84, 1
    %p88 = scmp.eq.s32.totalorder %s15, 3
    %p89 = scmp.ne.s32.totalorder %s84, %s86
    %p90 = scmp.eq.s32.totalorder %s15, 0
    %p91 = por %p89, %p90
    %p92 = scmp.ne.s32.totalorder %s84, %s86
    %p93 = scmp.eq.s32.totalorder %s20, 3
    %p94 = por %p92, %p93
    %p95 = scmp.ne.s32.totalorder %s86, %s87
    %p96 = scmp.eq.s32.totalorder %s20, 0
    %p97 = por %p95, %p96
    %p98 = scmp.ne.s32.totalorder %s86, %s87
    %p99 = scmp.eq.s32.totalorder %s21, 3
    %p100 = por %p98, %p99
    %p102 = scmp.ne.s32.totalorder %s87, %s101
    %p103 = scmp.eq.s32.totalorder %s21, 0
    %p104 = por %p102, %p103
    %s106 = sadd.s32 %s105, 1
    %p109 = scmp.eq.s32.totalorder %s15, 3
    %p110 = scmp.ne.s32.totalorder %s105, %s107
    %p111 = scmp.eq.s32.totalorder %s15, 0
    %p112 = por %p110, %p111
    %p113 = scmp.ne.s32.totalorder %s105, %s107
    %p114 = scmp.eq.s32.totalorder %s20, 3
    %p115 = por %p113, %p114
    %p116 = scmp.ne.s32.totalorder %s107, %s108
    %p117 = scmp.eq.s32.totalorder %s20, 0
    %p118 = por %p116, %p117
    %p119 = scmp.ne.s32.totalorder %s107, %s108
    %p120 = scmp.eq.s32.totalorder %s21, 3
    %p121 = por %p119, %p120
    %p123 = scmp.ne.s32.totalorder %s108, %s122
    %p124 = scmp.eq.s32.totalorder %s21, 0
    %p125 = por %p123, %p124
    %s127 = sadd.s32 %s126, 1
    %p130 = scmp.eq.s32.totalorder %s15, 3
    %p131 = scmp.ne.s32.totalorder %s126, %s128
    %p132 = scmp.eq.s32.totalorder %s15, 0
    %p133 = por %p131, %p132
    %p134 = scmp.ne.s32.totalorder %s126, %s128
    %p135 = scmp.eq.s32.totalorder %s20, 3
    %p136 = por %p134, %p135
    %p137 = scmp.ne.s32.totalorder %s128, %s129
    %p138 = scmp.eq.s32.totalorder %s20, 0
    %p139 = por %p137, %p138
    %p140 = scmp.ne.s32.totalorder %s128, %s129
    %p141 = scmp.eq.s32.totalorder %s21, 3
    %p142 = por %p140, %p141
    %p144 = scmp.ne.s32.totalorder %s129, %s143
    %p145 = scmp.eq.s32.totalorder %s21, 0
    %p146 = por %p144, %p145
    %s148 = sadd.s32 %s147, 1
    %p151 = scmp.eq.s32.totalorder %s15, 3
    %p152 = scmp.ne.s32.totalorder %s147, %s149
    %p153 = scmp.eq.s32.totalorder %s15, 0
    %p154 = por %p152, %p153
    %p155 = scmp.ne.s32.totalorder %s147, %s149
    %p156 = scmp.eq.s32.totalorder %s20, 3
    %p157 = por %p155, %p156
    %p158 = scmp.ne.s32.totalorder %s149, %s150
    %p159 = scmp.eq.s32.totalorder %s20, 0
    %p160 = por %p158, %p159
    %p161 = scmp.ne.s32.totalorder %s149, %s150
    %p162 = scmp.eq.s32.totalorder %s21, 3
    %p163 = por %p161, %p162
    %p165 = scmp.ne.s32.totalorder %s150, %s164
    %p166 = scmp.eq.s32.totalorder %s21, 0
    %p167 = por %p165, %p166
    %s169 = sadd.s32 %s168, 1
    %p172 = scmp.eq.s32.totalorder %s15, 3
    %p173 = scmp.ne.s32.totalorder %s168, %s170
    %p174 = scmp.eq.s32.totalorder %s15, 0
    %p175 = por %p173, %p174
    %p176 = scmp.ne.s32.totalorder %s168, %s170
    %p177 = scmp.eq.s32.totalorder %s20, 3
    %p178 = por %p176, %p177
    %p179 = scmp.ne.s32.totalorder %s170, %s171
    %p180 = scmp.eq.s32.totalorder %s20, 0
    %p181 = por %p179, %p180
    %p182 = scmp.ne.s32.totalorder %s170, %s171
    %p183 = scmp.eq.s32.totalorder %s21, 3
    %p184 = por %p182, %p183
    %p186 = scmp.ne.s32.totalorder %s171, %s185
    %p187 = scmp.eq.s32.totalorder %s21, 0
    %p188 = por %p186, %p187
    %s190 = sadd.s32 %s189, 1
    %p193 = scmp.eq.s32.totalorder %s15, 3
    %p194 = scmp.ne.s32.totalorder %s189, %s191
    %p195 = scmp.eq.s32.totalorder %s15, 0
    %p196 = por %p194, %p195
    %p197 = scmp.ne.s32.totalorder %s189, %s191
    %p198 = scmp.eq.s32.totalorder %s20, 3
    %p199 = por %p197, %p198
    %p200 = scmp.ne.s32.totalorder %s191, %s192
    %p201 = scmp.eq.s32.totalorder %s20, 0
    %p202 = por %p200, %p201
    %p203 = scmp.ne.s32.totalorder %s191, %s192
    %p204 = scmp.eq.s32.totalorder %s21, 3
    %p205 = por %p203, %p204
    %p207 = scmp.ne.s32.totalorder %s192, %s206
    %p208 = scmp.eq.s32.totalorder %s21, 0
    %p209 = por %p207, %p208
    %s211 = sadd.s32 %s210, 1
    %p214 = scmp.eq.s32.totalorder %s15, 3
    %p215 = scmp.ne.s32.totalorder %s210, %s212
    %p216 = scmp.eq.s32.totalorder %s15, 0
    %p217 = por %p215, %p216
    %p218 = scmp.ne.s32.totalorder %s210, %s212
    %p219 = scmp.eq.s32.totalorder %s20, 3
    %p220 = por %p218, %p219
    %p221 = scmp.ne.s32.totalorder %s212, %s213
    %p222 = scmp.eq.s32.totalorder %s20, 0
    %p223 = por %p221, %p222
    %p224 = scmp.ne.s32.totalorder %s212, %s213
    %p225 = scmp.eq.s32.totalorder %s21, 3
    %p226 = por %p224, %p225
    %p228 = scmp.ne.s32.totalorder %s213, %s227
    %p229 = scmp.eq.s32.totalorder %s21, 0
    %p230 = por %p228, %p229
    %s231 = ssub.s32 %s22, %s34
    %s232 = ssub.s32 %s23, %s30
    %s233 = sor.u32 %s231, %s232
    %p234 = scmp.eq.s32.totalorder %s233, 0
    %s236 = sadd.s32 %s235, 1
    %s237 = scalar_select %p234, %s235, %s236
    %p240 = pneg %p234
    %p241 = scmp.eq.s32.totalorder %s15, 3
    %p242 = por %p240, %p241
    %p243 = scmp.ne.s32.totalorder %s235, %s238
    %p244 = scmp.eq.s32.totalorder %s15, 0
    %p245 = por %p243, %p244
    %p246 = scmp.ne.s32.totalorder %s235, %s238
    %p247 = scmp.eq.s32.totalorder %s20, 3
    %p248 = por %p246, %p247
    %p249 = scmp.ne.s32.totalorder %s238, %s239
    %p250 = scmp.eq.s32.totalorder %s20, 0
    %p251 = por %p249, %p250
    %p252 = scmp.ne.s32.totalorder %s238, %s239
    %p253 = scmp.eq.s32.totalorder %s21, 3
    %p254 = por %p252, %p253
    %p256 = scmp.ne.s32.totalorder %s239, %s255
    %p257 = scmp.eq.s32.totalorder %s21, 0
    %p258 = por %p256, %p257
    %p259 = scmp.le.s32.totalorder 1, %s15
    %p260 = scmp.lt.s32.totalorder %s15, 5
    %p261 = pnand %p259, %p260
    %p262 = pneg %p261
    // Predicated region
    $region9: #{cascade_ssd_forward.1} parent=5 // pred_check
      _
    $region10: #{cascade_ssd_forward.1} parent=5 // pred_check_branch
      %264 = sbr.rel (%p261) target = $region12
    $region11: #{cascade_ssd_forward.1} parent=5 // pred_region
      %s265 = ssub.s32 %s15, 1
      // Predicated region
      $region13: #{cascade_ssd_forward.1} parent=11 // pred_check
        %p266 = pneg %p76
      $region14: #{cascade_ssd_forward.1} parent=11 // pred_check_branch
        %268 = sbr.rel (%p266) target = $region16
      $region15: #{cascade_ssd_forward.1} parent=11 // pred_region
        _
      $region16: #{cascade_ssd_forward.1} parent=11 // pred_fallthru
        _
      // Predicated region
      $region17: #{cascade_ssd_forward.1} parent=11 // pred_check
        %p269 = pneg %p97
      $region18: #{cascade_ssd_forward.1} parent=11 // pred_check_branch
        %271 = sbr.rel (%p269) target = $region20
      $region19: #{cascade_ssd_forward.1} parent=11 // pred_region
        _
      $region20: #{cascade_ssd_forward.1} parent=11 // pred_fallthru
        _
      // Predicated region
      $region21: #{cascade_ssd_forward.1} parent=11 // pred_check
        %p272 = pneg %p118
      $region22: #{cascade_ssd_forward.1} parent=11 // pred_check_branch
        %274 = sbr.rel (%p272) target = $region24
      $region23: #{cascade_ssd_forward.1} parent=11 // pred_region
        _
      $region24: #{cascade_ssd_forward.1} parent=11 // pred_fallthru
        _
      // Predicated region
      $region25: #{cascade_ssd_forward.1} parent=11 // pred_check
        %p275 = pneg %p139
      $region26: #{cascade_ssd_forward.1} parent=11 // pred_check_branch
        %277 = sbr.rel (%p275) target = $region28
      $region27: #{cascade_ssd_forward.1} parent=11 // pred_region
        _
      $region28: #{cascade_ssd_forward.1} parent=11 // pred_fallthru
        _
      // Predicated region
      $region29: #{cascade_ssd_forward.1} parent=11 // pred_check
        %p278 = pneg %p160
      $region30: #{cascade_ssd_forward.1} parent=11 // pred_check_branch
        %280 = sbr.rel (%p278) target = $region32
      $region31: #{cascade_ssd_forward.1} parent=11 // pred_region
        _
      $region32: #{cascade_ssd_forward.1} parent=11 // pred_fallthru
        _
      // Predicated region
      $region33: #{cascade_ssd_forward.1} parent=11 // pred_check
        %p281 = pneg %p181
      $region34: #{cascade_ssd_forward.1} parent=11 // pred_check_branch
        %283 = sbr.rel (%p281) target = $region36
      $region35: #{cascade_ssd_forward.1} parent=11 // pred_region
        _
      $region36: #{cascade_ssd_forward.1} parent=11 // pred_fallthru
        _
      // Predicated region
      $region37: #{cascade_ssd_forward.1} parent=11 // pred_check
        %p284 = pneg %p202
      $region38: #{cascade_ssd_forward.1} parent=11 // pred_check_branch
        %286 = sbr.rel (%p284) target = $region40
      $region39: #{cascade_ssd_forward.1} parent=11 // pred_region
        _
      $region40: #{cascade_ssd_forward.1} parent=11 // pred_fallthru
        _
      // Predicated region
      $region41: #{cascade_ssd_forward.1} parent=11 // pred_check
        %p287 = pneg %p223
      $region42: #{cascade_ssd_forward.1} parent=11 // pred_check_branch
        %289 = sbr.rel (%p287) target = $region44
      $region43: #{cascade_ssd_forward.1} parent=11 // pred_region
        _
      $region44: #{cascade_ssd_forward.1} parent=11 // pred_fallthru
        _
    $region12: #{cascade_ssd_forward.1} parent=5 // pred_fallthru
      _
    %p290 = scmp.lt.s32.totalorder %s15, 4
    // Predicated region
    $region45: #{cascade_ssd_forward.1} parent=5 // pred_check
      %p291 = pneg %p290
    $region46: #{cascade_ssd_forward.1} parent=5 // pred_check_branch
      %293 = sbr.rel (%p291) target = $region48
    $region47: #{cascade_ssd_forward.1} parent=5 // pred_region
      // Predicated region
      $region49: #{cascade_ssd_forward.1} parent=47 // pred_check
        %p294 = pneg %p49
      $region50: #{cascade_ssd_forward.1} parent=47 // pred_check_branch
        %296 = sbr.rel (%p294) target = $region52
      $region51: #{cascade_ssd_forward.1} parent=47 // pred_region
        %p297 = scmp.lt.s32.totalorder %s22, 1
        %s298 = scalar_select %p297, %s22, 1
        %p299 = scmp.lt.s32.totalorder %s23, 1
        %s300 = scalar_select %p299, %s23, 1
        %s301 = smul.addr %s300, 20
        %s302 = smul.addr %s298, 40
        %s303 = sadd.s32 %s301, %s302
        %s304 = smul.addr %s303, 4
        %s305 = scalar_lea.vmem %s0, %s304
      $region52: #{cascade_ssd_forward.1} parent=47 // pred_fallthru
        _
    $region48: #{cascade_ssd_forward.1} parent=5 // pred_fallthru
      _
    %p306 = scmp.le.s32.totalorder 1, %s15
    %p307 = scmp.lt.s32.totalorder %s15, 5
    %p308 = pnand %p306, %p307
    %p309 = pneg %p308
    // Predicated region
    $region53: #{cascade_ssd_forward.1} parent=5 // pred_check
      _
    $region54: #{cascade_ssd_forward.1} parent=5 // pred_check_branch
      %311 = sbr.rel (%p308) target = $region56
    $region55: #{cascade_ssd_forward.1} parent=5 // pred_region
      %s312 = ssub.s32 %s15, 1
      %p313 = scmp.lt.s32.totalorder %s24, 1
      %s314 = scalar_select %p313, %s24, 1
      %p315 = scmp.lt.s32.totalorder %s25, 1
      %s316 = scalar_select %p315, %s25, 1
      %s317 = smul.addr %s316, 20
      %s318 = smul.addr %s314, 40
      %s319 = sadd.s32 %s317, %s318
      %s320 = smul.addr %s319, 4
      %s321 = scalar_lea.vmem %s0, %s320
      %p322 = pneg %p55
      %p323 = pneg %p52
      %p324 = pneg %p76
      %p325 = pneg %p73
      %p326 = pneg %p97
      %p327 = pneg %p94
      %p328 = pneg %p118
      %p329 = pneg %p115
      %p330 = pneg %p139
      %p331 = pneg %p136
      %p332 = pneg %p160
      %p333 = pneg %p157
      %p334 = pneg %p181
      %p335 = pneg %p178
      %p336 = pneg %p202
      %p337 = pneg %p199
      %p338 = pneg %p223
      %p339 = pneg %p220
      %p340 = pneg %p251
      %p341 = pneg %p248
      %s342 = smul.u32 16, %s25
      %p343 = scmp.lt.s32.totalorder %s24, 1
      %s344 = scalar_select %p343, %s24, 1
      %p345 = scmp.lt.s32.totalorder %s342, 31
      %s346 = scalar_select %p345, %s342, 31
      %s347 = smul.addr %s344, 32
      %s348 = sadd.s32 %s346, %s347
      %s349 = smul.addr %s348, 4
      %s350 = scalar_lea.vmem %s9, %s349
      %p351 = scmp.lt.s32.totalorder %s24, 1
      %s352 = scalar_select %p351, %s24, 1
      %p353 = scmp.lt.s32.totalorder %s25, 1
      %s354 = scalar_select %p353, %s25, 1
      %s355 = smul.addr %s354, 20
      %s356 = smul.addr %s352, 40
      %s357 = sadd.s32 %s355, %s356
      %s358 = smul.addr %s357, 4
      %s359 = scalar_lea.vmem %s0, %s358
      %s360 = smul.u32 16, %s25
      %p361 = scmp.lt.s32.totalorder %s24, 1
      %s362 = scalar_select %p361, %s24, 1
      %p363 = scmp.lt.s32.totalorder %s360, 31
      %s364 = scalar_select %p363, %s360, 31
      %s365 = smul.addr %s362, 32
      %s366 = sadd.s32 %s364, %s365
      %s367 = smul.addr %s366, 4
      %s368 = scalar_lea.vmem %s9, %s367
      %s369 = smul.u32 16, %s25
      %v373 = vld [vmem:[%s359] sm:$0xf]
      %v374 = vld [vmem:[%s359 + $0x4] sm:$0xf]
      %v375 = vld [vmem:[%s359 + $0x8] sm:$0xf]
      %v376 = vld [vmem:[%s359 + $0xc] sm:$0xf]
      %v377 = vld [vmem:[%s359 + $0x10] sm:$0xf]
      %v378 = vld [vmem:[%s359 + $0x14] sm:$0xf]
      %v379 = vld [vmem:[%s359 + $0x18] sm:$0xf]
      %v380 = vld [vmem:[%s359 + $0x1c] sm:$0xf]
      %v381 = vld [vmem:[%s359 + $0x20] sm:$0xf]
      %v382 = vld [vmem:[%s359 + $0x24] sm:$0xf]
      %v383 = vld [vmem:[%s359 + $0x28] sm:$0xf]
      %v384 = vld [vmem:[%s359 + $0x2c] sm:$0xf]
      %v385 = vld [vmem:[%s359 + $0x30] sm:$0xf]
      %v386 = vld [vmem:[%s359 + $0x34] sm:$0xf]
      %v387 = vld [vmem:[%s359 + $0x38] sm:$0xf]
      %v388 = vld [vmem:[%s359 + $0x3c] sm:$0xf]
      %v389 = vld [vmem:[%s359 + $0x40] sm:$0xf]
      %v390 = vld [vmem:[%s359 + $0x44] sm:$0xf]
      %v391 = vld [vmem:[%s359 + $0x48] sm:$0xf]
      %v392 = vld [vmem:[%s359 + $0x4c] sm:$0xf]
      %v393 = vld [vmem:[%s1] sm:$0xf]
      %v394 = vld [vmem:[%s1 + $0x4] sm:$0xf]
      %v395 = vld [vmem:[%s1 + $0x8] sm:$0xf]
      %v396 = vld [vmem:[%s1 + $0xc] sm:$0xf]
      %v397 = vld [vmem:[%s1 + $0x10] sm:$0x3]
      %v398 = vld [vmem:[%s2] sm:$0x1]
      %v400 = vlaneseq
      %v401 = vshrl.u32 %v400, 7
      %v402 = vsub.s32 0, %v401
      %v403 = vrot.slane %v398, %v402
      %v425 = vunpack.c.l.b16 %v373
      %v426 = vunpack.c.l.b16 %v374
      %v427 = vunpack.c.l.b16 %v375
      %v428 = vunpack.c.l.b16 %v376
      %v429 = vunpack.c.l.b16 %v377
      %v430 = vunpack.c.l.b16 %v378
      %v431 = vunpack.c.l.b16 %v379
      %v432 = vunpack.c.l.b16 %v380
      %v433 = vunpack.c.l.b16 %v381
      %v434 = vunpack.c.l.b16 %v382
      %v435 = vunpack.c.l.b16 %v383
      %v436 = vunpack.c.l.b16 %v384
      %v437 = vunpack.c.l.b16 %v385
      %v438 = vunpack.c.l.b16 %v386
      %v439 = vunpack.c.l.b16 %v387
      %v440 = vunpack.c.l.b16 %v388
      %v441 = vunpack.c.l.b16 %v389
      %v442 = vunpack.c.l.b16 %v390
      %v443 = vunpack.c.l.b16 %v391
      %v444 = vunpack.c.l.b16 %v392
      %v445 = vpack.c.b16 %v426, %v425
      %v446 = vpack.c.b16 %v428, %v427
      %v447 = vpack.c.b16 %v430, %v429
      %v448 = vpack.c.b16 %v432, %v431
      %v449 = vpack.c.b16 %v434, %v433
      %v450 = vpack.c.b16 %v436, %v435
      %v451 = vpack.c.b16 %v438, %v437
      %v452 = vpack.c.b16 %v440, %v439
      %v453 = vpack.c.b16 %v442, %v441
      %v454 = vpack.c.b16 %v444, %v443
      %v460 = vunpack.c.l.b16 %v393
      %v461 = vunpack.c.l.b16 %v394
      %v462 = vunpack.c.l.b16 %v395
      %v463 = vunpack.c.l.b16 %v396
      %v464 = vunpack.c.l.b16 %v397
      %v465 = vpack.c.b16 %v461, %v460
      %v466 = vpack.c.b16 %v463, %v462
      %v467 = vpack.c.b16 %v464, %v464
      %vm470 = vcmask 293888
      %v472 = vsel %vm470, %v445, 0
      %v475 = vsel %vm470, %v446, 0
      %v478 = vsel %vm470, %v447, 0
      %v481 = vsel %vm470, %v448, 0
      %v484 = vsel %vm470, %v449, 0
      %v487 = vsel %vm470, %v450, 0
      %v490 = vsel %vm470, %v451, 0
      %v493 = vsel %vm470, %v452, 0
      %v496 = vsel %vm470, %v453, 0
      %v499 = vsel %vm470, %v454, 0
      %vm501 = vcmask 1041408
      %v503 = vsel %vm501, %v467, 0
      %505 = vmatprep.subr.bf16.mxu0 0
      %506 = vmatpush1.bf16.msra.mxu0 0
      %507 = vmatprep.subr.bf16.mxu0 0
      %508 = vmatpush1.bf16.msra.mxu0 0
      %509 = vmatprep.subr.bf16.mxu0 0
      %510 = vmatpush1.bf16.msra.mxu0 0
      %511 = vmatprep.subr.bf16.mxu0 0
      %512 = vmatpush1.bf16.msra.mxu0 0
      %513 = vmatprep.subr.bf16.mxu0 0
      %514 = vmatpush1.bf16.msra.mxu0 0
      %515 = vmatprep.subr.bf16.mxu0 0
      %516 = vmatpush1.bf16.msra.mxu0 %v503
      %517 = vmatprep.subr.bf16.mxu0 0
      %518 = vmatpush1.bf16.msra.mxu0 %v466
      %519 = vmatprep.subr.bf16.mxu0 0
      %520 = vmatpush1.bf16.msra.mxu0 %v465
      %521 = vmatprep.subr.bf16.mxu0 0
      %522 = vmatpush2.bf16.msra.mxu0 0
      %523 = vmatprep.subr.bf16.mxu0 0
      %524 = vmatpush2.bf16.msra.mxu0 0
      %525 = vmatprep.subr.bf16.mxu0 0
      %526 = vmatpush2.bf16.msra.mxu0 0
      %527 = vmatprep.subr.bf16.mxu0 0
      %528 = vmatpush2.bf16.msra.mxu0 0
      %529 = vmatprep.subr.bf16.mxu0 0
      %530 = vmatpush2.bf16.msra.mxu0 0
      %531 = vmatprep.subr.bf16.mxu0 0
      %532 = vmatpush2.bf16.msra.mxu0 0
      %533 = vmatprep.subr.bf16.mxu0 0
      %534 = vmatpush2.bf16.msra.mxu0 0
      %535 = vmatprep.subr.bf16.mxu0 0
      %536 = vmatpush2.bf16.msra.mxu0 0
      %537 = vmatprep.mubr.bf16.mxu0 0
      %538 = vmatmul.mubr.bf16.gmra.mxu0 %v472
      %v539 = vpop.f32.mrf.mxu0
      %v540 = vadd.f32 %v403, %v539
      %v541 = vpop.f32.mrf.mxu0
      %v542 = vpop.f32.mrf.mxu0
      %v543 = vadd.f32 %v403, %v542
      %v544 = vpop.f32.mrf.mxu0
      %545 = vmatprep.mubr.bf16.mxu0 0
      %546 = vmatmul.mubr.bf16.gmra.mxu0 %v475
      %v547 = vpop.f32.mrf.mxu0
      %v548 = vadd.f32 %v403, %v547
      %v549 = vpop.f32.mrf.mxu0
      %v550 = vpop.f32.mrf.mxu0
      %v551 = vadd.f32 %v403, %v550
      %v552 = vpop.f32.mrf.mxu0
      %553 = vmatprep.mubr.bf16.mxu0 0
      %554 = vmatmul.mubr.bf16.gmra.mxu0 %v478
      %v555 = vpop.f32.mrf.mxu0
      %v556 = vadd.f32 %v403, %v555
      %v557 = vpop.f32.mrf.mxu0
      %v558 = vpop.f32.mrf.mxu0
      %v559 = vadd.f32 %v403, %v558
      %v560 = vpop.f32.mrf.mxu0
      %561 = vmatprep.mubr.bf16.mxu0 0
      %562 = vmatmul.mubr.bf16.gmra.mxu0 %v481
      %v563 = vpop.f32.mrf.mxu0
      %v564 = vadd.f32 %v403, %v563
      %v565 = vpop.f32.mrf.mxu0
      %v566 = vpop.f32.mrf.mxu0
      %v567 = vadd.f32 %v403, %v566
      %v568 = vpop.f32.mrf.mxu0
      %569 = vmatprep.mubr.bf16.mxu0 0
      %570 = vmatmul.mubr.bf16.gmra.mxu0 %v484
      %v571 = vpop.f32.mrf.mxu0
      %v572 = vadd.f32 %v403, %v571
      %v573 = vpop.f32.mrf.mxu0
      %v574 = vpop.f32.mrf.mxu0
      %v575 = vadd.f32 %v403, %v574
      %v576 = vpop.f32.mrf.mxu0
      %577 = vmatprep.mubr.bf16.mxu0 0
      %578 = vmatmul.mubr.bf16.gmra.mxu0 %v487
      %v579 = vpop.f32.mrf.mxu0
      %v580 = vadd.f32 %v403, %v579
      %v581 = vpop.f32.mrf.mxu0
      %v582 = vpop.f32.mrf.mxu0
      %v583 = vadd.f32 %v403, %v582
      %v584 = vpop.f32.mrf.mxu0
      %585 = vmatprep.mubr.bf16.mxu0 0
      %586 = vmatmul.mubr.bf16.gmra.mxu0 %v490
      %v587 = vpop.f32.mrf.mxu0
      %v588 = vadd.f32 %v403, %v587
      %v589 = vpop.f32.mrf.mxu0
      %v590 = vpop.f32.mrf.mxu0
      %v591 = vadd.f32 %v403, %v590
      %v592 = vpop.f32.mrf.mxu0
      %593 = vmatprep.mubr.bf16.mxu0 0
      %594 = vmatmul.mubr.bf16.gmra.mxu0 %v493
      %v595 = vpop.f32.mrf.mxu0
      %v596 = vadd.f32 %v403, %v595
      %v597 = vpop.f32.mrf.mxu0
      %v598 = vpop.f32.mrf.mxu0
      %v599 = vadd.f32 %v403, %v598
      %v600 = vpop.f32.mrf.mxu0
      %601 = vmatprep.mubr.bf16.mxu0 0
      %602 = vmatmul.mubr.bf16.gmra.mxu0 %v496
      %v603 = vpop.f32.mrf.mxu0
      %v604 = vadd.f32 %v403, %v603
      %v605 = vpop.f32.mrf.mxu0
      %v606 = vpop.f32.mrf.mxu0
      %v607 = vadd.f32 %v403, %v606
      %v608 = vpop.f32.mrf.mxu0
      %609 = vmatprep.mubr.bf16.mxu0 0
      %610 = vmatmul.mubr.bf16.gmra.mxu0 %v499
      %v611 = vpop.f32.mrf.mxu0
      %v612 = vadd.f32 %v403, %v611
      %v613 = vpop.f32.mrf.mxu0
      %v614 = vpop.f32.mrf.mxu0
      %v615 = vadd.f32 %v403, %v614
      %v616 = vpop.f32.mrf.mxu0
      %617 = vdwg.mxu0
      %v618 = vmax.f32 %v540, 0.0
      %v619 = vmax.f32 %v543, 0.0
      %v620 = vmax.f32 %v548, 0.0
      %v621 = vmax.f32 %v551, 0.0
      %v622 = vmax.f32 %v556, 0.0
      %v623 = vmax.f32 %v559, 0.0
      %v624 = vmax.f32 %v564, 0.0
      %v625 = vmax.f32 %v567, 0.0
      %v626 = vmax.f32 %v572, 0.0
      %v627 = vmax.f32 %v575, 0.0
      %v628 = vmax.f32 %v580, 0.0
      %v629 = vmax.f32 %v583, 0.0
      %v630 = vmax.f32 %v588, 0.0
      %v631 = vmax.f32 %v591, 0.0
      %v632 = vmax.f32 %v596, 0.0
      %v633 = vmax.f32 %v599, 0.0
      %v634 = vmax.f32 %v604, 0.0
      %v635 = vmax.f32 %v607, 0.0
      %v636 = vmax.f32 %v612, 0.0
      %v637 = vmax.f32 %v615, 0.0
      %v638 = vpack.c.bf16 %v619, %v618
      %v639 = vpack.c.bf16 %v621, %v620
      %v640 = vpack.c.bf16 %v623, %v622
      %v641 = vpack.c.bf16 %v625, %v624
      %v642 = vpack.c.bf16 %v627, %v626
      %v643 = vpack.c.bf16 %v629, %v628
      %v644 = vpack.c.bf16 %v631, %v630
      %v645 = vpack.c.bf16 %v633, %v632
      %v646 = vpack.c.bf16 %v635, %v634
      %v647 = vpack.c.bf16 %v637, %v636
      %v648 = vld [vmem:[%s3] sm:$0xf]
      %v649 = vld [vmem:[%s3 + $0x4] sm:$0xf]
      %v650 = vld [vmem:[%s3 + $0x8] sm:$0xf]
      %v651 = vld [vmem:[%s3 + $0xc] sm:$0xf]
      %v652 = vld [vmem:[%s4] sm:$0x1]
      %v654 = vlaneseq
      %v655 = vshrl.u32 %v654, 7
      %v656 = vsub.s32 0, %v655
      %v657 = vrot.slane %v652, %v656
      %v663 = vunpack.c.l.b16 %v648
      %v664 = vunpack.c.l.b16 %v649
      %v665 = vunpack.c.l.b16 %v650
      %v666 = vunpack.c.l.b16 %v651
      %v667 = vpack.c.b16 %v664, %v663
      %v668 = vpack.c.b16 %v666, %v665
      %vm671 = vcmask 261120
      %v673 = vsel %vm671, %v638, 0
      %v676 = vsel %vm671, %v639, 0
      %v679 = vsel %vm671, %v640, 0
      %v682 = vsel %vm671, %v641, 0
      %v685 = vsel %vm671, %v642, 0
      %v688 = vsel %vm671, %v643, 0
      %v691 = vsel %vm671, %v644, 0
      %v694 = vsel %vm671, %v645, 0
      %v697 = vsel %vm671, %v646, 0
      %v700 = vsel %vm671, %v647, 0
      %702 = vmatprep.subr.bf16.mxu0 0
      %703 = vmatpush1.bf16.msra.mxu0 0
      %704 = vmatprep.subr.bf16.mxu0 0
      %705 = vmatpush1.bf16.msra.mxu0 0
      %706 = vmatprep.subr.bf16.mxu0 0
      %707 = vmatpush1.bf16.msra.mxu0 0
      %708 = vmatprep.subr.bf16.mxu0 0
      %709 = vmatpush1.bf16.msra.mxu0 0
      %710 = vmatprep.subr.bf16.mxu0 0
      %711 = vmatpush1.bf16.msra.mxu0 0
      %712 = vmatprep.subr.bf16.mxu0 0
      %713 = vmatpush1.bf16.msra.mxu0 0
      %714 = vmatprep.subr.bf16.mxu0 0
      %715 = vmatpush1.bf16.msra.mxu0 %v668
      %716 = vmatprep.subr.bf16.mxu0 0
      %717 = vmatpush1.bf16.msra.mxu0 %v667
      %718 = vmatprep.subr.bf16.mxu0 0
      %719 = vmatpush2.bf16.msra.mxu0 0
      %720 = vmatprep.subr.bf16.mxu0 0
      %721 = vmatpush2.bf16.msra.mxu0 0
      %722 = vmatprep.subr.bf16.mxu0 0
      %723 = vmatpush2.bf16.msra.mxu0 0
      %724 = vmatprep.subr.bf16.mxu0 0
      %725 = vmatpush2.bf16.msra.mxu0 0
      %726 = vmatprep.subr.bf16.mxu0 0
      %727 = vmatpush2.bf16.msra.mxu0 0
      %728 = vmatprep.subr.bf16.mxu0 0
      %729 = vmatpush2.bf16.msra.mxu0 0
      %730 = vmatprep.subr.bf16.mxu0 0
      %731 = vmatpush2.bf16.msra.mxu0 0
      %732 = vmatprep.subr.bf16.mxu0 0
      %733 = vmatpush2.bf16.msra.mxu0 0
      %734 = vmatprep.mubr.bf16.mxu0 0
      %735 = vmatmul.mubr.bf16.gmra.mxu0 %v673
      %v736 = vpop.f32.mrf.mxu0
      %v737 = vadd.f32 %v657, %v736
      %v738 = vpop.f32.mrf.mxu0
      %v739 = vpop.f32.mrf.mxu0
      %v740 = vadd.f32 %v657, %v739
      %v741 = vpop.f32.mrf.mxu0
      %742 = vmatprep.mubr.bf16.mxu0 0
      %743 = vmatmul.mubr.bf16.gmra.mxu0 %v676
      %v744 = vpop.f32.mrf.mxu0
      %v745 = vadd.f32 %v657, %v744
      %v746 = vpop.f32.mrf.mxu0
      %v747 = vpop.f32.mrf.mxu0
      %v748 = vadd.f32 %v657, %v747
      %v749 = vpop.f32.mrf.mxu0
      %750 = vmatprep.mubr.bf16.mxu0 0
      %751 = vmatmul.mubr.bf16.gmra.mxu0 %v679
      %v752 = vpop.f32.mrf.mxu0
      %v753 = vadd.f32 %v657, %v752
      %v754 = vpop.f32.mrf.mxu0
      %v755 = vpop.f32.mrf.mxu0
      %v756 = vadd.f32 %v657, %v755
      %v757 = vpop.f32.mrf.mxu0
      %758 = vmatprep.mubr.bf16.mxu0 0
      %759 = vmatmul.mubr.bf16.gmra.mxu0 %v682
      %v760 = vpop.f32.mrf.mxu0
      %v761 = vadd.f32 %v657, %v760
      %v762 = vpop.f32.mrf.mxu0
      %v763 = vpop.f32.mrf.mxu0
      %v764 = vadd.f32 %v657, %v763
      %v765 = vpop.f32.mrf.mxu0
      %766 = vmatprep.mubr.bf16.mxu0 0
      %767 = vmatmul.mubr.bf16.gmra.mxu0 %v685
      %v768 = vpop.f32.mrf.mxu0
      %v769 = vadd.f32 %v657, %v768
      %v770 = vpop.f32.mrf.mxu0
      %v771 = vpop.f32.mrf.mxu0
      %v772 = vadd.f32 %v657, %v771
      %v773 = vpop.f32.mrf.mxu0
      %774 = vmatprep.mubr.bf16.mxu0 0
      %775 = vmatmul.mubr.bf16.gmra.mxu0 %v688
      %v776 = vpop.f32.mrf.mxu0
      %v777 = vadd.f32 %v657, %v776
      %v778 = vpop.f32.mrf.mxu0
      %v779 = vpop.f32.mrf.mxu0
      %v780 = vadd.f32 %v657, %v779
      %v781 = vpop.f32.mrf.mxu0
      %782 = vmatprep.mubr.bf16.mxu0 0
      %783 = vmatmul.mubr.bf16.gmra.mxu0 %v691
      %v784 = vpop.f32.mrf.mxu0
      %v785 = vadd.f32 %v657, %v784
      %v786 = vpop.f32.mrf.mxu0
      %v787 = vpop.f32.mrf.mxu0
      %v788 = vadd.f32 %v657, %v787
      %v789 = vpop.f32.mrf.mxu0
      %790 = vmatprep.mubr.bf16.mxu0 0
      %791 = vmatmul.mubr.bf16.gmra.mxu0 %v694
      %v792 = vpop.f32.mrf.mxu0
      %v793 = vadd.f32 %v657, %v792
      %v794 = vpop.f32.mrf.mxu0
      %v795 = vpop.f32.mrf.mxu0
      %v796 = vadd.f32 %v657, %v795
      %v797 = vpop.f32.mrf.mxu0
      %798 = vmatprep.mubr.bf16.mxu0 0
      %799 = vmatmul.mubr.bf16.gmra.mxu0 %v697
      %v800 = vpop.f32.mrf.mxu0
      %v801 = vadd.f32 %v657, %v800
      %v802 = vpop.f32.mrf.mxu0
      %v803 = vpop.f32.mrf.mxu0
      %v804 = vadd.f32 %v657, %v803
      %v805 = vpop.f32.mrf.mxu0
      %806 = vmatprep.mubr.bf16.mxu0 0
      %807 = vmatmul.mubr.bf16.gmra.mxu0 %v700
      %v808 = vpop.f32.mrf.mxu0
      %v809 = vadd.f32 %v657, %v808
      %v810 = vpop.f32.mrf.mxu0
      %v811 = vpop.f32.mrf.mxu0
      %v812 = vadd.f32 %v657, %v811
      %v813 = vpop.f32.mrf.mxu0
      %814 = vdwg.mxu0
      %v815 = vmax.f32 %v737, 0.0
      %v816 = vmax.f32 %v740, 0.0
      %v817 = vmax.f32 %v745, 0.0
      %v818 = vmax.f32 %v748, 0.0
      %v819 = vmax.f32 %v753, 0.0
      %v820 = vmax.f32 %v756, 0.0
      %v821 = vmax.f32 %v761, 0.0
      %v822 = vmax.f32 %v764, 0.0
      %v823 = vmax.f32 %v769, 0.0
      %v824 = vmax.f32 %v772, 0.0
      %v825 = vmax.f32 %v777, 0.0
      %v826 = vmax.f32 %v780, 0.0
      %v827 = vmax.f32 %v785, 0.0
      %v828 = vmax.f32 %v788, 0.0
      %v829 = vmax.f32 %v793, 0.0
      %v830 = vmax.f32 %v796, 0.0
      %v831 = vmax.f32 %v801, 0.0
      %v832 = vmax.f32 %v804, 0.0
      %v833 = vmax.f32 %v809, 0.0
      %v834 = vmax.f32 %v812, 0.0
      %v835 = vpack.c.bf16 %v816, %v815
      %v836 = vpack.c.bf16 %v818, %v817
      %v837 = vpack.c.bf16 %v820, %v819
      %v838 = vpack.c.bf16 %v822, %v821
      %v839 = vpack.c.bf16 %v824, %v823
      %v840 = vpack.c.bf16 %v826, %v825
      %v841 = vpack.c.bf16 %v828, %v827
      %v842 = vpack.c.bf16 %v830, %v829
      %v843 = vpack.c.bf16 %v832, %v831
      %v844 = vpack.c.bf16 %v834, %v833
      %v855 = vunpack.c.l.b16 %v835
      %v856 = vunpack.c.h.b16 %v835
      %v857 = vunpack.c.l.b16 %v836
      %v858 = vunpack.c.h.b16 %v836
      %v859 = vunpack.c.l.b16 %v837
      %v860 = vunpack.c.h.b16 %v837
      %v861 = vunpack.c.l.b16 %v838
      %v862 = vunpack.c.h.b16 %v838
      %v863 = vunpack.c.l.b16 %v839
      %v864 = vunpack.c.h.b16 %v839
      %v865 = vunpack.c.l.b16 %v840
      %v866 = vunpack.c.h.b16 %v840
      %v867 = vunpack.c.l.b16 %v841
      %v868 = vunpack.c.h.b16 %v841
      %v869 = vunpack.c.l.b16 %v842
      %v870 = vunpack.c.h.b16 %v842
      %v871 = vunpack.c.l.b16 %v843
      %v872 = vunpack.c.h.b16 %v843
      %v873 = vunpack.c.l.b16 %v844
      %v874 = vunpack.c.h.b16 %v844
      %v875 = vpack.c.b16 %v855, %v855
      %v876 = vpack.c.b16 %v856, %v856
      %v877 = vpack.c.b16 %v857, %v857
      %v878 = vpack.c.b16 %v858, %v858
      %v879 = vpack.c.b16 %v859, %v859
      %v880 = vpack.c.b16 %v860, %v860
      %v881 = vpack.c.b16 %v861, %v861
      %v882 = vpack.c.b16 %v862, %v862
      %v883 = vpack.c.b16 %v863, %v863
      %v884 = vpack.c.b16 %v864, %v864
      %v885 = vpack.c.b16 %v865, %v865
      %v886 = vpack.c.b16 %v866, %v866
      %v887 = vpack.c.b16 %v867, %v867
      %v888 = vpack.c.b16 %v868, %v868
      %v889 = vpack.c.b16 %v869, %v869
      %v890 = vpack.c.b16 %v870, %v870
      %v891 = vpack.c.b16 %v871, %v871
      %v892 = vpack.c.b16 %v872, %v872
      %v893 = vpack.c.b16 %v873, %v873
      %v894 = vpack.c.b16 %v874, %v874
      %vm915 = vcmask 257024
      %916 = vst.msk [vmem:[#allocation2 + $0x8] sm:$0xf] %vm915, %v875
      %917 = vst.msk [vmem:[#allocation2 + $0xc] sm:$0xf] %vm915, %v876
      %918 = vst.msk [vmem:[#allocation2 + $0x10] sm:$0xf] %vm915, %v877
      %919 = vst.msk [vmem:[#allocation2 + $0x14] sm:$0xf] %vm915, %v878
      %920 = vst.msk [vmem:[#allocation2 + $0x18] sm:$0xf] %vm915, %v879
      %921 = vst.msk [vmem:[#allocation2 + $0x1c] sm:$0xf] %vm915, %v880
      %922 = vst.msk [vmem:[#allocation2 + $0x20] sm:$0xf] %vm915, %v881
      %923 = vst.msk [vmem:[#allocation2 + $0x24] sm:$0xf] %vm915, %v882
      %924 = vst.msk [vmem:[#allocation2 + $0x28] sm:$0xf] %vm915, %v883
      %925 = vst.msk [vmem:[#allocation2 + $0x2c] sm:$0xf] %vm915, %v884
      %926 = vst.msk [vmem:[#allocation2 + $0x30] sm:$0xf] %vm915, %v885
      %927 = vst.msk [vmem:[#allocation2 + $0x34] sm:$0xf] %vm915, %v886
      %928 = vst.msk [vmem:[#allocation2 + $0x38] sm:$0xf] %vm915, %v887
      %929 = vst.msk [vmem:[#allocation2 + $0x3c] sm:$0xf] %vm915, %v888
      %930 = vst.msk [vmem:[#allocation2 + $0x40] sm:$0xf] %vm915, %v889
      %931 = vst.msk [vmem:[#allocation2 + $0x44] sm:$0xf] %vm915, %v890
      %932 = vst.msk [vmem:[#allocation2 + $0x48] sm:$0xf] %vm915, %v891
      %933 = vst.msk [vmem:[#allocation2 + $0x4c] sm:$0xf] %vm915, %v892
      %934 = vst.msk [vmem:[#allocation2 + $0x50] sm:$0xf] %vm915, %v893
      %935 = vst.msk [vmem:[#allocation2 + $0x54] sm:$0xf] %vm915, %v894
      %p936 = scmp.eq.s32.totalorder %s25, 0
      // Predicated region
      $region57: #{cascade_ssd_forward.1} parent=55 // pred_check
        %p937 = pneg %p936
      $region58: #{cascade_ssd_forward.1} parent=55 // pred_check_branch
        %939 = sbr.rel (%p937) target = $region60
      $region59: #{cascade_ssd_forward.1} parent=55 // pred_region
        %940 = vst.msk [vmem:[#allocation2 + $0x8] sm:$0xf] %vm915, 0
        %941 = vst.msk [vmem:[#allocation2 + $0xc] sm:$0xf] %vm915, 0
      $region60: #{cascade_ssd_forward.1} parent=55 // pred_fallthru
        _
      %p942 = scmp.eq.s32.totalorder %s25, 1
      // Predicated region
      $region61: #{cascade_ssd_forward.1} parent=55 // pred_check
        %p943 = pneg %p942
      $region62: #{cascade_ssd_forward.1} parent=55 // pred_check_branch
        %945 = sbr.rel (%p943) target = $region64
      $region63: #{cascade_ssd_forward.1} parent=55 // pred_region
        %946 = vst.msk [vmem:[#allocation2 + $0x50] sm:$0xf] %vm915, 0
        %947 = vst.msk [vmem:[#allocation2 + $0x54] sm:$0xf] %vm915, 0
      $region64: #{cascade_ssd_forward.1} parent=55 // pred_fallthru
        _
      %v948 = vlaneseq
      %v949 = vshrl.u32 %v948, 7
      %v950 = vadd.s32 %v949, 8
      %v951 = vadd.s32 %v949, 16
      %v952 = vadd.s32 %v949, 24
      %v953 = vadd.s32 %v949, 32
      %v954 = vadd.s32 %v949, 40
      %v955 = vadd.s32 %v949, 48
      %v956 = vadd.s32 %v949, 56
      %v957 = vadd.s32 %v949, 64
      %v958 = vadd.s32 %v949, 72
      %v959 = vadd.s32 %v949, 80
      %v960 = vadd.s32 %v949, 88
      %v961 = vadd.s32 %v949, 96
      %v962 = vadd.s32 %v949, 104
      %v963 = vadd.s32 %v949, 112
      %v964 = vadd.s32 %v949, 120
      %vm965 = vcmp.lt.s32.totalorder %v949, 0
      %v966 = vsub.s32 0, %v949
      %v967 = vsel %vm965, %v966, %v949
      %v968 = vshrl.u32 %v967, 4
      %v969 = vand.u32 %v967, 15
      %v970 = vsub.s32 0, %v969
      %v971 = vsel %vm965, %v970, %v969
      %vm972 = vcmp.lt.s32.totalorder %v950, 0
      %v973 = vsub.s32 0, %v950
      %v974 = vsel %vm972, %v973, %v950
      %v975 = vshrl.u32 %v974, 4
      %v976 = vand.u32 %v974, 15
      %v977 = vsub.s32 0, %v976
      %v978 = vsel %vm972, %v977, %v976
      %vm979 = vcmp.lt.s32.totalorder %v951, 0
      %v980 = vsub.s32 0, %v951
      %v981 = vsel %vm979, %v980, %v951
      %v982 = vshrl.u32 %v981, 4
      %v983 = vand.u32 %v981, 15
      %v984 = vsub.s32 0, %v983
      %v985 = vsel %vm979, %v984, %v983
      %vm986 = vcmp.lt.s32.totalorder %v952, 0
      %v987 = vsub.s32 0, %v952
      %v988 = vsel %vm986, %v987, %v952
      %v989 = vshrl.u32 %v988, 4
      %v990 = vand.u32 %v988, 15
      %v991 = vsub.s32 0, %v990
      %v992 = vsel %vm986, %v991, %v990
      %vm993 = vcmp.lt.s32.totalorder %v953, 0
      %v994 = vsub.s32 0, %v953
      %v995 = vsel %vm993, %v994, %v953
      %v996 = vshrl.u32 %v995, 4
      %v997 = vand.u32 %v995, 15
      %v998 = vsub.s32 0, %v997
      %v999 = vsel %vm993, %v998, %v997
      %vm1000 = vcmp.lt.s32.totalorder %v954, 0
      %v1001 = vsub.s32 0, %v954
      %v1002 = vsel %vm1000, %v1001, %v954
      %v1003 = vshrl.u32 %v1002, 4
      %v1004 = vand.u32 %v1002, 15
      %v1005 = vsub.s32 0, %v1004
      %v1006 = vsel %vm1000, %v1005, %v1004
      %vm1007 = vcmp.lt.s32.totalorder %v955, 0
      %v1008 = vsub.s32 0, %v955
      %v1009 = vsel %vm1007, %v1008, %v955
      %v1010 = vshrl.u32 %v1009, 4
      %v1011 = vand.u32 %v1009, 15
      %v1012 = vsub.s32 0, %v1011
      %v1013 = vsel %vm1007, %v1012, %v1011
      %vm1014 = vcmp.lt.s32.totalorder %v956, 0
      %v1015 = vsub.s32 0, %v956
      %v1016 = vsel %vm1014, %v1015, %v956
      %v1017 = vshrl.u32 %v1016, 4
      %v1018 = vand.u32 %v1016, 15
      %v1019 = vsub.s32 0, %v1018
      %v1020 = vsel %vm1014, %v1019, %v1018
      %vm1021 = vcmp.lt.s32.totalorder %v957, 0
      %v1022 = vsub.s32 0, %v957
      %v1023 = vsel %vm1021, %v1022, %v957
      %v1024 = vshrl.u32 %v1023, 4
      %v1025 = vand.u32 %v1023, 15
      %v1026 = vsub.s32 0, %v1025
      %v1027 = vsel %vm1021, %v1026, %v1025
      %vm1028 = vcmp.lt.s32.totalorder %v958, 0
      %v1029 = vsub.s32 0, %v958
      %v1030 = vsel %vm1028, %v1029, %v958
      %v1031 = vshrl.u32 %v1030, 4
      %v1032 = vand.u32 %v1030, 15
      %v1033 = vsub.s32 0, %v1032
      %v1034 = vsel %vm1028, %v1033, %v1032
      %vm1035 = vcmp.lt.s32.totalorder %v959, 0
      %v1036 = vsub.s32 0, %v959
      %v1037 = vsel %vm1035, %v1036, %v959
      %v1038 = vshrl.u32 %v1037, 4
      %v1039 = vand.u32 %v1037, 15
      %v1040 = vsub.s32 0, %v1039
      %v1041 = vsel %vm1035, %v1040, %v1039
      %vm1042 = vcmp.lt.s32.totalorder %v960, 0
      %v1043 = vsub.s32 0, %v960
      %v1044 = vsel %vm1042, %v1043, %v960
      %v1045 = vshrl.u32 %v1044, 4
      %v1046 = vand.u32 %v1044, 15
      %v1047 = vsub.s32 0, %v1046
      %v1048 = vsel %vm1042, %v1047, %v1046
      %vm1049 = vcmp.lt.s32.totalorder %v961, 0
      %v1050 = vsub.s32 0, %v961
      %v1051 = vsel %vm1049, %v1050, %v961
      %v1052 = vshrl.u32 %v1051, 4
      %v1053 = vand.u32 %v1051, 15
      %v1054 = vsub.s32 0, %v1053
      %v1055 = vsel %vm1049, %v1054, %v1053
      %vm1056 = vcmp.lt.s32.totalorder %v962, 0
      %v1057 = vsub.s32 0, %v962
      %v1058 = vsel %vm1056, %v1057, %v962
      %v1059 = vshrl.u32 %v1058, 4
      %v1060 = vand.u32 %v1058, 15
      %v1061 = vsub.s32 0, %v1060
      %v1062 = vsel %vm1056, %v1061, %v1060
      %vm1063 = vcmp.lt.s32.totalorder %v963, 0
      %v1064 = vsub.s32 0, %v963
      %v1065 = vsel %vm1063, %v1064, %v963
      %v1066 = vshrl.u32 %v1065, 4
      %v1067 = vand.u32 %v1065, 15
      %v1068 = vsub.s32 0, %v1067
      %v1069 = vsel %vm1063, %v1068, %v1067
      %vm1070 = vcmp.lt.s32.totalorder %v964, 0
      %v1071 = vsub.s32 0, %v964
      %v1072 = vsel %vm1070, %v1071, %v964
      %v1073 = vshrl.u32 %v1072, 4
      %v1074 = vand.u32 %v1072, 15
      %v1075 = vsub.s32 0, %v1074
      %v1076 = vsel %vm1070, %v1075, %v1074
      %vm1077 = vcmp.ne.s32.totalorder %v971, 0
      %vm1078 = vcmp.ne.s32.totalorder %v978, 0
      %vm1079 = vcmp.ne.s32.totalorder %v985, 0
      %vm1080 = vcmp.ne.s32.totalorder %v992, 0
      %vm1081 = vcmp.ne.s32.totalorder %v999, 0
      %vm1082 = vcmp.ne.s32.totalorder %v1006, 0
      %vm1083 = vcmp.ne.s32.totalorder %v1013, 0
      %vm1084 = vcmp.ne.s32.totalorder %v1020, 0
      %vm1085 = vcmp.ne.s32.totalorder %v1027, 0
      %vm1086 = vcmp.ne.s32.totalorder %v1034, 0
      %vm1087 = vcmp.ne.s32.totalorder %v1041, 0
      %vm1088 = vcmp.ne.s32.totalorder %v1048, 0
      %vm1089 = vcmp.ne.s32.totalorder %v1055, 0
      %vm1090 = vcmp.ne.s32.totalorder %v1062, 0
      %vm1091 = vcmp.ne.s32.totalorder %v1069, 0
      %vm1092 = vcmp.ne.s32.totalorder %v1076, 0
      %vm1093 = vcmp.lt.s32.totalorder %v971, 0
      %vm1094 = vcmp.lt.s32.totalorder %v978, 0
      %vm1095 = vcmp.lt.s32.totalorder %v985, 0
      %vm1096 = vcmp.lt.s32.totalorder %v992, 0
      %vm1097 = vcmp.lt.s32.totalorder %v999, 0
      %vm1098 = vcmp.lt.s32.totalorder %v1006, 0
      %vm1099 = vcmp.lt.s32.totalorder %v1013, 0
      %vm1100 = vcmp.lt.s32.totalorder %v1020, 0
      %vm1101 = vcmp.lt.s32.totalorder %v1027, 0
      %vm1102 = vcmp.lt.s32.totalorder %v1034, 0
      %vm1103 = vcmp.lt.s32.totalorder %v1041, 0
      %vm1104 = vcmp.lt.s32.totalorder %v1048, 0
      %vm1105 = vcmp.lt.s32.totalorder %v1055, 0
      %vm1106 = vcmp.lt.s32.totalorder %v1062, 0
      %vm1107 = vcmp.lt.s32.totalorder %v1069, 0
      %vm1108 = vcmp.lt.s32.totalorder %v1076, 0
      %vm1109 = vmand %vm1093, %vm1077
      %vm1110 = vmand %vm1094, %vm1078
      %vm1111 = vmand %vm1095, %vm1079
      %vm1112 = vmand %vm1096, %vm1080
      %vm1113 = vmand %vm1097, %vm1081
      %vm1114 = vmand %vm1098, %vm1082
      %vm1115 = vmand %vm1099, %vm1083
      %vm1116 = vmand %vm1100, %vm1084
      %vm1117 = vmand %vm1101, %vm1085
      %vm1118 = vmand %vm1102, %vm1086
      %vm1119 = vmand %vm1103, %vm1087
      %vm1120 = vmand %vm1104, %vm1088
      %vm1121 = vmand %vm1105, %vm1089
      %vm1122 = vmand %vm1106, %vm1090
      %vm1123 = vmand %vm1107, %vm1091
      %vm1124 = vmand %vm1108, %vm1092
      %v1125 = vadd.s32 %v971, 16
      %v1126 = vadd.s32 %v978, 16
      %v1127 = vadd.s32 %v985, 16
      %v1128 = vadd.s32 %v992, 16
      %v1129 = vadd.s32 %v999, 16
      %v1130 = vadd.s32 %v1006, 16
      %v1131 = vadd.s32 %v1013, 16
      %v1132 = vadd.s32 %v1020, 16
      %v1133 = vadd.s32 %v1027, 16
      %v1134 = vadd.s32 %v1034, 16
      %v1135 = vadd.s32 %v1041, 16
      %v1136 = vadd.s32 %v1048, 16
      %v1137 = vadd.s32 %v1055, 16
      %v1138 = vadd.s32 %v1062, 16
      %v1139 = vadd.s32 %v1069, 16
      %v1140 = vadd.s32 %v1076, 16
      %v1141 = vsel %vm1109, %v1125, %v971
      %v1142 = vsel %vm1110, %v1126, %v978
      %v1143 = vsel %vm1111, %v1127, %v985
      %v1144 = vsel %vm1112, %v1128, %v992
      %v1145 = vsel %vm1113, %v1129, %v999
      %v1146 = vsel %vm1114, %v1130, %v1006
      %v1147 = vsel %vm1115, %v1131, %v1013
      %v1148 = vsel %vm1116, %v1132, %v1020
      %v1149 = vsel %vm1117, %v1133, %v1027
      %v1150 = vsel %vm1118, %v1134, %v1034
      %v1151 = vsel %vm1119, %v1135, %v1041
      %v1152 = vsel %vm1120, %v1136, %v1048
      %v1153 = vsel %vm1121, %v1137, %v1055
      %v1154 = vsel %vm1122, %v1138, %v1062
      %v1155 = vsel %vm1123, %v1139, %v1069
      %v1156 = vsel %vm1124, %v1140, %v1076
      %vm1157 = vcmp.ne.s32.totalorder %v1141, 0
      %vm1158 = vcmp.ne.s32.totalorder %v1142, 0
      %vm1159 = vcmp.ne.s32.totalorder %v1143, 0
      %vm1160 = vcmp.ne.s32.totalorder %v1144, 0
      %vm1161 = vcmp.ne.s32.totalorder %v1145, 0
      %vm1162 = vcmp.ne.s32.totalorder %v1146, 0
      %vm1163 = vcmp.ne.s32.totalorder %v1147, 0
      %vm1164 = vcmp.ne.s32.totalorder %v1148, 0
      %vm1165 = vcmp.ne.s32.totalorder %v1149, 0
      %vm1166 = vcmp.ne.s32.totalorder %v1150, 0
      %vm1167 = vcmp.ne.s32.totalorder %v1151, 0
      %vm1168 = vcmp.ne.s32.totalorder %v1152, 0
      %vm1169 = vcmp.ne.s32.totalorder %v1153, 0
      %vm1170 = vcmp.ne.s32.totalorder %v1154, 0
      %vm1171 = vcmp.ne.s32.totalorder %v1155, 0
      %vm1172 = vcmp.ne.s32.totalorder %v1156, 0
      %vm1173 = vcmp.ne.s32.totalorder %v1141, 15
      %vm1174 = vcmp.ne.s32.totalorder %v1142, 15
      %vm1175 = vcmp.ne.s32.totalorder %v1143, 15
      %vm1176 = vcmp.ne.s32.totalorder %v1144, 15
      %vm1177 = vcmp.ne.s32.totalorder %v1145, 15
      %vm1178 = vcmp.ne.s32.totalorder %v1146, 15
      %vm1179 = vcmp.ne.s32.totalorder %v1147, 15
      %vm1180 = vcmp.ne.s32.totalorder %v1148, 15
      %vm1181 = vcmp.ne.s32.totalorder %v1149, 15
      %vm1182 = vcmp.ne.s32.totalorder %v1150, 15
      %vm1183 = vcmp.ne.s32.totalorder %v1151, 15
      %vm1184 = vcmp.ne.s32.totalorder %v1152, 15
      %vm1185 = vcmp.ne.s32.totalorder %v1153, 15
      %vm1186 = vcmp.ne.s32.totalorder %v1154, 15
      %vm1187 = vcmp.ne.s32.totalorder %v1155, 15
      %vm1188 = vcmp.ne.s32.totalorder %v1156, 15
      %v1189 = vld [vmem:[#allocation2 + $0x4] sm:$0x8]
      %v1190 = vld [vmem:[#allocation2 + $0x8] sm:$0xf]
      %v1191 = vld [vmem:[#allocation2 + $0xc] sm:$0xf]
      %v1192 = vld [vmem:[#allocation2 + $0x10] sm:$0xf]
      %v1193 = vld [vmem:[#allocation2 + $0x14] sm:$0xf]
      %v1194 = vld [vmem:[#allocation2 + $0x18] sm:$0xf]
      %v1195 = vld [vmem:[#allocation2 + $0x1c] sm:$0xf]
      %v1196 = vld [vmem:[#allocation2 + $0x20] sm:$0xf]
      %v1197 = vld [vmem:[#allocation2 + $0x24] sm:$0xf]
      %v1198 = vld [vmem:[#allocation2 + $0x28] sm:$0xf]
      %v1199 = vld [vmem:[#allocation2 + $0x2c] sm:$0xf]
      %v1200 = vld [vmem:[#allocation2 + $0x30] sm:$0xf]
      %v1201 = vld [vmem:[#allocation2 + $0x34] sm:$0xf]
      %v1202 = vld [vmem:[#allocation2 + $0x38] sm:$0xf]
      %v1203 = vld [vmem:[#allocation2 + $0x3c] sm:$0xf]
      %v1204 = vld [vmem:[#allocation2 + $0x40] sm:$0xf]
      %v1205 = vld [vmem:[#allocation2 + $0x44] sm:$0xf]
      %v1206 = vsel %vm1157, 1, 0
      %v1207 = vsel %vm1158, 1, 0
      %v1208 = vsel %vm1159, 1, 0
      %v1209 = vsel %vm1160, 1, 0
      %v1210 = vsel %vm1161, 1, 0
      %v1211 = vsel %vm1162, 1, 0
      %v1212 = vsel %vm1163, 1, 0
      %v1213 = vsel %vm1164, 1, 0
      %v1214 = vsel %vm1165, 1, 0
      %v1215 = vsel %vm1166, 1, 0
      %v1216 = vsel %vm1167, 1, 0
      %v1217 = vsel %vm1168, 1, 0
      %v1218 = vsel %vm1169, 1, 0
      %v1219 = vsel %vm1170, 1, 0
      %v1220 = vsel %vm1171, 1, 0
      %v1221 = vsel %vm1172, 1, 0
      %vm1222 = vcmp.eq.s32.totalorder %v1206, 1
      %vm1223 = vcmp.eq.s32.totalorder %v1207, 1
      %vm1224 = vcmp.eq.s32.totalorder %v1208, 1
      %vm1225 = vcmp.eq.s32.totalorder %v1209, 1
      %vm1226 = vcmp.eq.s32.totalorder %v1210, 1
      %vm1227 = vcmp.eq.s32.totalorder %v1211, 1
      %vm1228 = vcmp.eq.s32.totalorder %v1212, 1
      %vm1229 = vcmp.eq.s32.totalorder %v1213, 1
      %vm1230 = vcmp.eq.s32.totalorder %v1214, 1
      %vm1231 = vcmp.eq.s32.totalorder %v1215, 1
      %vm1232 = vcmp.eq.s32.totalorder %v1216, 1
      %vm1233 = vcmp.eq.s32.totalorder %v1217, 1
      %vm1234 = vcmp.eq.s32.totalorder %v1218, 1
      %vm1235 = vcmp.eq.s32.totalorder %v1219, 1
      %vm1236 = vcmp.eq.s32.totalorder %v1220, 1
      %vm1237 = vcmp.eq.s32.totalorder %v1221, 1
      %vm1238 = vmpackc.low %vm1222, %vm1222
      %vm1239 = vmpackc.low %vm1223, %vm1223
      %vm1240 = vmpackc.low %vm1224, %vm1224
      %vm1241 = vmpackc.low %vm1225, %vm1225
      %vm1242 = vmpackc.low %vm1226, %vm1226
      %vm1243 = vmpackc.low %vm1227, %vm1227
      %vm1244 = vmpackc.low %vm1228, %vm1228
      %vm1245 = vmpackc.low %vm1229, %vm1229
      %vm1246 = vmpackc.low %vm1230, %vm1230
      %vm1247 = vmpackc.low %vm1231, %vm1231
      %vm1248 = vmpackc.low %vm1232, %vm1232
      %vm1249 = vmpackc.low %vm1233, %vm1233
      %vm1250 = vmpackc.low %vm1234, %vm1234
      %vm1251 = vmpackc.low %vm1235, %vm1235
      %vm1252 = vmpackc.low %vm1236, %vm1236
      %vm1253 = vmpackc.low %vm1237, %vm1237
      %v1254 = vsel %vm1238, 65537, 0
      %v1255 = vsel %vm1239, 65537, 0
      %v1256 = vsel %vm1240, 65537, 0
      %v1257 = vsel %vm1241, 65537, 0
      %v1258 = vsel %vm1242, 65537, 0
      %v1259 = vsel %vm1243, 65537, 0
      %v1260 = vsel %vm1244, 65537, 0
      %v1261 = vsel %vm1245, 65537, 0
      %v1262 = vsel %vm1246, 65537, 0
      %v1263 = vsel %vm1247, 65537, 0
      %v1264 = vsel %vm1248, 65537, 0
      %v1265 = vsel %vm1249, 65537, 0
      %v1266 = vsel %vm1250, 65537, 0
      %v1267 = vsel %vm1251, 65537, 0
      %v1268 = vsel %vm1252, 65537, 0
      %v1269 = vsel %vm1253, 65537, 0
      %vm1270 = vsmask.f32 3328
      %vm1271 = vsmask.f32 7440
      %vm1272 = vmor %vm1270, %vm1271
      %v1274 = vshll.u32 %v1254, 16
      %v1276 = vrot.slane %v1274, 5
      %v1277 = vshrl.u32 %v1254, 16
      %v1279 = vrot.slane %v1277, 4
      %v1280 = vor.u32 %v1279, %v1276
      %v1281 = vrot.slane %v1280, 4
      %v1283 = vshll.u32 %v1255, 16
      %v1285 = vrot.slane %v1283, 5
      %v1286 = vsel %vm1272, %v1281, %v1285
      %v1287 = vshrl.u32 %v1255, 16
      %v1289 = vrot.slane %v1287, 4
      %v1290 = vor.u32 %v1289, %v1285
      %v1291 = vrot.slane %v1290, 4
      %v1293 = vshll.u32 %v1256, 16
      %v1295 = vrot.slane %v1293, 5
      %v1296 = vsel %vm1272, %v1291, %v1295
      %v1297 = vshrl.u32 %v1256, 16
      %v1299 = vrot.slane %v1297, 4
      %v1300 = vor.u32 %v1299, %v1295
      %v1301 = vrot.slane %v1300, 4
      %v1303 = vshll.u32 %v1257, 16
      %v1305 = vrot.slane %v1303, 5
      %v1306 = vsel %vm1272, %v1301, %v1305
      %v1307 = vshrl.u32 %v1257, 16
      %v1309 = vrot.slane %v1307, 4
      %v1310 = vor.u32 %v1309, %v1305
      %v1311 = vrot.slane %v1310, 4
      %v1313 = vshll.u32 %v1258, 16
      %v1315 = vrot.slane %v1313, 5
      %v1316 = vsel %vm1272, %v1311, %v1315
      %v1317 = vshrl.u32 %v1258, 16
      %v1319 = vrot.slane %v1317, 4
      %v1320 = vor.u32 %v1319, %v1315
      %v1321 = vrot.slane %v1320, 4
      %v1323 = vshll.u32 %v1259, 16
      %v1325 = vrot.slane %v1323, 5
      %v1326 = vsel %vm1272, %v1321, %v1325
      %v1327 = vshrl.u32 %v1259, 16
      %v1329 = vrot.slane %v1327, 4
      %v1330 = vor.u32 %v1329, %v1325
      %v1331 = vrot.slane %v1330, 4
      %v1333 = vshll.u32 %v1260, 16
      %v1335 = vrot.slane %v1333, 5
      %v1336 = vsel %vm1272, %v1331, %v1335
      %v1337 = vshrl.u32 %v1260, 16
      %v1339 = vrot.slane %v1337, 4
      %v1340 = vor.u32 %v1339, %v1335
      %v1341 = vrot.slane %v1340, 4
      %v1343 = vshll.u32 %v1261, 16
      %v1345 = vrot.slane %v1343, 5
      %v1346 = vsel %vm1272, %v1341, %v1345
      %v1347 = vshrl.u32 %v1261, 16
      %v1349 = vrot.slane %v1347, 4
      %v1350 = vor.u32 %v1349, %v1345
      %v1351 = vrot.slane %v1350, 4
      %v1353 = vshll.u32 %v1262, 16
      %v1355 = vrot.slane %v1353, 5
      %v1356 = vsel %vm1272, %v1351, %v1355
      %v1357 = vshrl.u32 %v1262, 16
      %v1359 = vrot.slane %v1357, 4
      %v1360 = vor.u32 %v1359, %v1355
      %v1361 = vrot.slane %v1360, 4
      %v1363 = vshll.u32 %v1263, 16
      %v1365 = vrot.slane %v1363, 5
      %v1366 = vsel %vm1272, %v1361, %v1365
      %v1367 = vshrl.u32 %v1263, 16
      %v1369 = vrot.slane %v1367, 4
      %v1370 = vor.u32 %v1369, %v1365
      %v1371 = vrot.slane %v1370, 4
      %v1373 = vshll.u32 %v1264, 16
      %v1375 = vrot.slane %v1373, 5
      %v1376 = vsel %vm1272, %v1371, %v1375
      %v1377 = vshrl.u32 %v1264, 16
      %v1379 = vrot.slane %v1377, 4
      %v1380 = vor.u32 %v1379, %v1375
      %v1381 = vrot.slane %v1380, 4
      %v1383 = vshll.u32 %v1265, 16
      %v1385 = vrot.slane %v1383, 5
      %v1386 = vsel %vm1272, %v1381, %v1385
      %v1387 = vshrl.u32 %v1265, 16
      %v1389 = vrot.slane %v1387, 4
      %v1390 = vor.u32 %v1389, %v1385
      %v1391 = vrot.slane %v1390, 4
      %v1393 = vshll.u32 %v1266, 16
      %v1395 = vrot.slane %v1393, 5
      %v1396 = vsel %vm1272, %v1391, %v1395
      %v1397 = vshrl.u32 %v1266, 16
      %v1399 = vrot.slane %v1397, 4
      %v1400 = vor.u32 %v1399, %v1395
      %v1401 = vrot.slane %v1400, 4
      %v1403 = vshll.u32 %v1267, 16
      %v1405 = vrot.slane %v1403, 5
      %v1406 = vsel %vm1272, %v1401, %v1405
      %v1407 = vshrl.u32 %v1267, 16
      %v1409 = vrot.slane %v1407, 4
      %v1410 = vor.u32 %v1409, %v1405
      %v1411 = vrot.slane %v1410, 4
      %v1413 = vshll.u32 %v1268, 16
      %v1415 = vrot.slane %v1413, 5
      %v1416 = vsel %vm1272, %v1411, %v1415
      %v1417 = vshrl.u32 %v1268, 16
      %v1419 = vrot.slane %v1417, 4
      %v1420 = vor.u32 %v1419, %v1415
      %v1421 = vrot.slane %v1420, 4
      %v1423 = vshll.u32 %v1269, 16
      %v1425 = vrot.slane %v1423, 5
      %v1426 = vsel %vm1272, %v1421, %v1425
      %v1427 = vshrl.u32 %v1269, 16
      %v1429 = vrot.slane %v1427, 4
      %v1430 = vor.u32 %v1429, %v1425
      %v1431 = vrot.slane %v1430, 4
      %vm1432 = vcmp.ne.s16.totalorder %v1276, 0
      %vm1433 = vcmp.ne.s16.totalorder %v1286, 0
      %vm1434 = vcmp.ne.s16.totalorder %v1296, 0
      %vm1435 = vcmp.ne.s16.totalorder %v1306, 0
      %vm1436 = vcmp.ne.s16.totalorder %v1316, 0
      %vm1437 = vcmp.ne.s16.totalorder %v1326, 0
      %vm1438 = vcmp.ne.s16.totalorder %v1336, 0
      %vm1439 = vcmp.ne.s16.totalorder %v1346, 0
      %vm1440 = vcmp.ne.s16.totalorder %v1356, 0
      %vm1441 = vcmp.ne.s16.totalorder %v1366, 0
      %vm1442 = vcmp.ne.s16.totalorder %v1376, 0
      %vm1443 = vcmp.ne.s16.totalorder %v1386, 0
      %vm1444 = vcmp.ne.s16.totalorder %v1396, 0
      %vm1445 = vcmp.ne.s16.totalorder %v1406, 0
      %vm1446 = vcmp.ne.s16.totalorder %v1416, 0
      %vm1447 = vcmp.ne.s16.totalorder %v1426, 0
      %vm1448 = vcmp.ne.s16.totalorder %v1431, 0
      %v1449 = vsel %vm1432, %v1189, 0
      %v1450 = vsel %vm1433, %v1190, 0
      %v1451 = vsel %vm1434, %v1191, 0
      %v1452 = vsel %vm1435, %v1192, 0
      %v1453 = vsel %vm1436, %v1193, 0
      %v1454 = vsel %vm1437, %v1194, 0
      %v1455 = vsel %vm1438, %v1195, 0
      %v1456 = vsel %vm1439, %v1196, 0
      %v1457 = vsel %vm1440, %v1197, 0
      %v1458 = vsel %vm1441, %v1198, 0
      %v1459 = vsel %vm1442, %v1199, 0
      %v1460 = vsel %vm1443, %v1200, 0
      %v1461 = vsel %vm1444, %v1201, 0
      %v1462 = vsel %vm1445, %v1202, 0
      %v1463 = vsel %vm1446, %v1203, 0
      %v1464 = vsel %vm1447, %v1204, 0
      %v1465 = vsel %vm1448, %v1205, 0
      %v1466 = vld [vmem:[#allocation2 + $0x48] sm:$0x1]
      %v1467 = vsel %vm1173, 1, 0
      %v1468 = vsel %vm1174, 1, 0
      %v1469 = vsel %vm1175, 1, 0
      %v1470 = vsel %vm1176, 1, 0
      %v1471 = vsel %vm1177, 1, 0
      %v1472 = vsel %vm1178, 1, 0
      %v1473 = vsel %vm1179, 1, 0
      %v1474 = vsel %vm1180, 1, 0
      %v1475 = vsel %vm1181, 1, 0
      %v1476 = vsel %vm1182, 1, 0
      %v1477 = vsel %vm1183, 1, 0
      %v1478 = vsel %vm1184, 1, 0
      %v1479 = vsel %vm1185, 1, 0
      %v1480 = vsel %vm1186, 1, 0
      %v1481 = vsel %vm1187, 1, 0
      %v1482 = vsel %vm1188, 1, 0
      %vm1483 = vcmp.eq.s32.totalorder %v1467, 1
      %vm1484 = vcmp.eq.s32.totalorder %v1468, 1
      %vm1485 = vcmp.eq.s32.totalorder %v1469, 1
      %vm1486 = vcmp.eq.s32.totalorder %v1470, 1
      %vm1487 = vcmp.eq.s32.totalorder %v1471, 1
      %vm1488 = vcmp.eq.s32.totalorder %v1472, 1
      %vm1489 = vcmp.eq.s32.totalorder %v1473, 1
      %vm1490 = vcmp.eq.s32.totalorder %v1474, 1
      %vm1491 = vcmp.eq.s32.totalorder %v1475, 1
      %vm1492 = vcmp.eq.s32.totalorder %v1476, 1
      %vm1493 = vcmp.eq.s32.totalorder %v1477, 1
      %vm1494 = vcmp.eq.s32.totalorder %v1478, 1
      %vm1495 = vcmp.eq.s32.totalorder %v1479, 1
      %vm1496 = vcmp.eq.s32.totalorder %v1480, 1
      %vm1497 = vcmp.eq.s32.totalorder %v1481, 1
      %vm1498 = vcmp.eq.s32.totalorder %v1482, 1
      %vm1499 = vmpackc.low %vm1483, %vm1483
      %vm1500 = vmpackc.low %vm1484, %vm1484
      %vm1501 = vmpackc.low %vm1485, %vm1485
      %vm1502 = vmpackc.low %vm1486, %vm1486
      %vm1503 = vmpackc.low %vm1487, %vm1487
      %vm1504 = vmpackc.low %vm1488, %vm1488
      %vm1505 = vmpackc.low %vm1489, %vm1489
      %vm1506 = vmpackc.low %vm1490, %vm1490
      %vm1507 = vmpackc.low %vm1491, %vm1491
      %vm1508 = vmpackc.low %vm1492, %vm1492
      %vm1509 = vmpackc.low %vm1493, %vm1493
      %vm1510 = vmpackc.low %vm1494, %vm1494
      %vm1511 = vmpackc.low %vm1495, %vm1495
      %vm1512 = vmpackc.low %vm1496, %vm1496
      %vm1513 = vmpackc.low %vm1497, %vm1497
      %vm1514 = vmpackc.low %vm1498, %vm1498
      %v1515 = vsel %vm1499, 65537, 0
      %v1516 = vsel %vm1500, 65537, 0
      %v1517 = vsel %vm1501, 65537, 0
      %v1518 = vsel %vm1502, 65537, 0
      %v1519 = vsel %vm1503, 65537, 0
      %v1520 = vsel %vm1504, 65537, 0
      %v1521 = vsel %vm1505, 65537, 0
      %v1522 = vsel %vm1506, 65537, 0
      %v1523 = vsel %vm1507, 65537, 0
      %v1524 = vsel %vm1508, 65537, 0
      %v1525 = vsel %vm1509, 65537, 0
      %v1526 = vsel %vm1510, 65537, 0
      %v1527 = vsel %vm1511, 65537, 0
      %v1528 = vsel %vm1512, 65537, 0
      %v1529 = vsel %vm1513, 65537, 0
      %v1530 = vsel %vm1514, 65537, 0
      %vm1531 = vsmask.f32 256
      %vm1532 = vsmask.f32 4368
      %vm1533 = vmor %vm1531, %vm1532
      %v1535 = vshrl.u32 %v1515, 16
      %v1537 = vrot.slane %v1535, 7
      %v1538 = vshll.u32 %v1515, 16
      %v1540 = vor.u32 %v1537, %v1538
      %v1541 = vrot.slane %v1537, 4
      %v1543 = vshrl.u32 %v1516, 16
      %v1545 = vrot.slane %v1543, 7
      %v1546 = vshll.u32 %v1516, 16
      %v1548 = vor.u32 %v1545, %v1546
      %v1549 = vsel %vm1533, %v1541, %v1548
      %v1550 = vrot.slane %v1545, 4
      %v1552 = vshrl.u32 %v1517, 16
      %v1554 = vrot.slane %v1552, 7
      %v1555 = vshll.u32 %v1517, 16
      %v1557 = vor.u32 %v1554, %v1555
      %v1558 = vsel %vm1533, %v1550, %v1557
      %v1559 = vrot.slane %v1554, 4
      %v1561 = vshrl.u32 %v1518, 16
      %v1563 = vrot.slane %v1561, 7
      %v1564 = vshll.u32 %v1518, 16
      %v1566 = vor.u32 %v1563, %v1564
      %v1567 = vsel %vm1533, %v1559, %v1566
      %v1568 = vrot.slane %v1563, 4
      %v1570 = vshrl.u32 %v1519, 16
      %v1572 = vrot.slane %v1570, 7
      %v1573 = vshll.u32 %v1519, 16
      %v1575 = vor.u32 %v1572, %v1573
      %v1576 = vsel %vm1533, %v1568, %v1575
      %v1577 = vrot.slane %v1572, 4
      %v1579 = vshrl.u32 %v1520, 16
      %v1581 = vrot.slane %v1579, 7
      %v1582 = vshll.u32 %v1520, 16
      %v1584 = vor.u32 %v1581, %v1582
      %v1585 = vsel %vm1533, %v1577, %v1584
      %v1586 = vrot.slane %v1581, 4
      %v1588 = vshrl.u32 %v1521, 16
      %v1590 = vrot.slane %v1588, 7
      %v1591 = vshll.u32 %v1521, 16
      %v1593 = vor.u32 %v1590, %v1591
      %v1594 = vsel %vm1533, %v1586, %v1593
      %v1595 = vrot.slane %v1590, 4
      %v1597 = vshrl.u32 %v1522, 16
      %v1599 = vrot.slane %v1597, 7
      %v1600 = vshll.u32 %v1522, 16
      %v1602 = vor.u32 %v1599, %v1600
      %v1603 = vsel %vm1533, %v1595, %v1602
      %v1604 = vrot.slane %v1599, 4
      %v1606 = vshrl.u32 %v1523, 16
      %v1608 = vrot.slane %v1606, 7
      %v1609 = vshll.u32 %v1523, 16
      %v1611 = vor.u32 %v1608, %v1609
      %v1612 = vsel %vm1533, %v1604, %v1611
      %v1613 = vrot.slane %v1608, 4
      %v1615 = vshrl.u32 %v1524, 16
      %v1617 = vrot.slane %v1615, 7
      %v1618 = vshll.u32 %v1524, 16
      %v1620 = vor.u32 %v1617, %v1618
      %v1621 = vsel %vm1533, %v1613, %v1620
      %v1622 = vrot.slane %v1617, 4
      %v1624 = vshrl.u32 %v1525, 16
      %v1626 = vrot.slane %v1624, 7
      %v1627 = vshll.u32 %v1525, 16
      %v1629 = vor.u32 %v1626, %v1627
      %v1630 = vsel %vm1533, %v1622, %v1629
      %v1631 = vrot.slane %v1626, 4
      %v1633 = vshrl.u32 %v1526, 16
      %v1635 = vrot.slane %v1633, 7
      %v1636 = vshll.u32 %v1526, 16
      %v1638 = vor.u32 %v1635, %v1636
      %v1639 = vsel %vm1533, %v1631, %v1638
      %v1640 = vrot.slane %v1635, 4
      %v1642 = vshrl.u32 %v1527, 16
      %v1644 = vrot.slane %v1642, 7
      %v1645 = vshll.u32 %v1527, 16
      %v1647 = vor.u32 %v1644, %v1645
      %v1648 = vsel %vm1533, %v1640, %v1647
      %v1649 = vrot.slane %v1644, 4
      %v1651 = vshrl.u32 %v1528, 16
      %v1653 = vrot.slane %v1651, 7
      %v1654 = vshll.u32 %v1528, 16
      %v1656 = vor.u32 %v1653, %v1654
      %v1657 = vsel %vm1533, %v1649, %v1656
      %v1658 = vrot.slane %v1653, 4
      %v1660 = vshrl.u32 %v1529, 16
      %v1662 = vrot.slane %v1660, 7
      %v1663 = vshll.u32 %v1529, 16
      %v1665 = vor.u32 %v1662, %v1663
      %v1666 = vsel %vm1533, %v1658, %v1665
      %v1667 = vrot.slane %v1662, 4
      %v1669 = vshrl.u32 %v1530, 16
      %v1671 = vrot.slane %v1669, 7
      %v1672 = vshll.u32 %v1530, 16
      %v1674 = vor.u32 %v1671, %v1672
      %v1675 = vsel %vm1533, %v1667, %v1674
      %v1676 = vrot.slane %v1671, 4
      %vm1677 = vcmp.ne.s16.totalorder %v1540, 0
      %vm1678 = vcmp.ne.s16.totalorder %v1549, 0
      %vm1679 = vcmp.ne.s16.totalorder %v1558, 0
      %vm1680 = vcmp.ne.s16.totalorder %v1567, 0
      %vm1681 = vcmp.ne.s16.totalorder %v1576, 0
      %vm1682 = vcmp.ne.s16.totalorder %v1585, 0
      %vm1683 = vcmp.ne.s16.totalorder %v1594, 0
      %vm1684 = vcmp.ne.s16.totalorder %v1603, 0
      %vm1685 = vcmp.ne.s16.totalorder %v1612, 0
      %vm1686 = vcmp.ne.s16.totalorder %v1621, 0
      %vm1687 = vcmp.ne.s16.totalorder %v1630, 0
      %vm1688 = vcmp.ne.s16.totalorder %v1639, 0
      %vm1689 = vcmp.ne.s16.totalorder %v1648, 0
      %vm1690 = vcmp.ne.s16.totalorder %v1657, 0
      %vm1691 = vcmp.ne.s16.totalorder %v1666, 0
      %vm1692 = vcmp.ne.s16.totalorder %v1675, 0
      %vm1693 = vcmp.ne.s16.totalorder %v1676, 0
      %v1694 = vsel %vm1677, %v1190, 0
      %v1695 = vsel %vm1678, %v1191, 0
      %v1696 = vsel %vm1679, %v1192, 0
      %v1697 = vsel %vm1680, %v1193, 0
      %v1698 = vsel %vm1681, %v1194, 0
      %v1699 = vsel %vm1682, %v1195, 0
      %v1700 = vsel %vm1683, %v1196, 0
      %v1701 = vsel %vm1684, %v1197, 0
      %v1702 = vsel %vm1685, %v1198, 0
      %v1703 = vsel %vm1686, %v1199, 0
      %v1704 = vsel %vm1687, %v1200, 0
      %v1705 = vsel %vm1688, %v1201, 0
      %v1706 = vsel %vm1689, %v1202, 0
      %v1707 = vsel %vm1690, %v1203, 0
      %v1708 = vsel %vm1691, %v1204, 0
      %v1709 = vsel %vm1692, %v1205, 0
      %v1710 = vsel %vm1693, %v1466, 0
      %v1711 = vld [vmem:[#allocation2 + $0xc] sm:$0x8]
      %v1712 = vld [vmem:[#allocation2 + $0x48] sm:$0xf]
      %v1713 = vld [vmem:[#allocation2 + $0x4c] sm:$0xf]
      %v1714 = vsel %vm1432, %v1711, 0
      %v1715 = vsel %vm1433, %v1192, 0
      %v1716 = vsel %vm1434, %v1193, 0
      %v1717 = vsel %vm1435, %v1194, 0
      %v1718 = vsel %vm1436, %v1195, 0
      %v1719 = vsel %vm1437, %v1196, 0
      %v1720 = vsel %vm1438, %v1197, 0
      %v1721 = vsel %vm1439, %v1198, 0
      %v1722 = vsel %vm1440, %v1199, 0
      %v1723 = vsel %vm1441, %v1200, 0
      %v1724 = vsel %vm1442, %v1201, 0
      %v1725 = vsel %vm1443, %v1202, 0
      %v1726 = vsel %vm1444, %v1203, 0
      %v1727 = vsel %vm1445, %v1204, 0
      %v1728 = vsel %vm1446, %v1205, 0
      %v1729 = vsel %vm1447, %v1712, 0
      %v1730 = vsel %vm1448, %v1713, 0
      %v1731 = vld [vmem:[#allocation2 + $0x50] sm:$0x1]
      %v1732 = vsel %vm1677, %v1192, 0
      %v1733 = vsel %vm1678, %v1193, 0
      %v1734 = vsel %vm1679, %v1194, 0
      %v1735 = vsel %vm1680, %v1195, 0
      %v1736 = vsel %vm1681, %v1196, 0
      %v1737 = vsel %vm1682, %v1197, 0
      %v1738 = vsel %vm1683, %v1198, 0
      %v1739 = vsel %vm1684, %v1199, 0
      %v1740 = vsel %vm1685, %v1200, 0
      %v1741 = vsel %vm1686, %v1201, 0
      %v1742 = vsel %vm1687, %v1202, 0
      %v1743 = vsel %vm1688, %v1203, 0
      %v1744 = vsel %vm1689, %v1204, 0
      %v1745 = vsel %vm1690, %v1205, 0
      %v1746 = vsel %vm1691, %v1712, 0
      %v1747 = vsel %vm1692, %v1713, 0
      %v1748 = vsel %vm1693, %v1731, 0
      %v1749 = vld [vmem:[#allocation2 + $0x14] sm:$0x8]
      %v1750 = vld [vmem:[#allocation2 + $0x50] sm:$0xf]
      %v1751 = vld [vmem:[#allocation2 + $0x54] sm:$0xf]
      %v1752 = vsel %vm1432, %v1749, 0
      %v1753 = vsel %vm1433, %v1194, 0
      %v1754 = vsel %vm1434, %v1195, 0
      %v1755 = vsel %vm1435, %v1196, 0
      %v1756 = vsel %vm1436, %v1197, 0
      %v1757 = vsel %vm1437, %v1198, 0
      %v1758 = vsel %vm1438, %v1199, 0
      %v1759 = vsel %vm1439, %v1200, 0
      %v1760 = vsel %vm1440, %v1201, 0
      %v1761 = vsel %vm1441, %v1202, 0
      %v1762 = vsel %vm1442, %v1203, 0
      %v1763 = vsel %vm1443, %v1204, 0
      %v1764 = vsel %vm1444, %v1205, 0
      %v1765 = vsel %vm1445, %v1712, 0
      %v1766 = vsel %vm1446, %v1713, 0
      %v1767 = vsel %vm1447, %v1750, 0
      %v1768 = vsel %vm1448, %v1751, 0
      %v1769 = vld [vmem:[#allocation2 + $0x58] sm:$0x1]
      %v1770 = vsel %vm1677, %v1194, 0
      %v1771 = vsel %vm1678, %v1195, 0
      %v1772 = vsel %vm1679, %v1196, 0
      %v1773 = vsel %vm1680, %v1197, 0
      %v1774 = vsel %vm1681, %v1198, 0
      %v1775 = vsel %vm1682, %v1199, 0
      %v1776 = vsel %vm1683, %v1200, 0
      %v1777 = vsel %vm1684, %v1201, 0
      %v1778 = vsel %vm1685, %v1202, 0
      %v1779 = vsel %vm1686, %v1203, 0
      %v1780 = vsel %vm1687, %v1204, 0
      %v1781 = vsel %vm1688, %v1205, 0
      %v1782 = vsel %vm1689, %v1712, 0
      %v1783 = vsel %vm1690, %v1713, 0
      %v1784 = vsel %vm1691, %v1750, 0
      %v1785 = vsel %vm1692, %v1751, 0
      %v1786 = vsel %vm1693, %v1769, 0
      %v1804 = vunpack.c.l.b16 %v1449
      %v1805 = vunpack.c.l.b16 %v1450
      %v1806 = vunpack.c.l.b16 %v1451
      %v1807 = vunpack.c.l.b16 %v1452
      %v1808 = vunpack.c.l.b16 %v1453
      %v1809 = vunpack.c.l.b16 %v1454
      %v1810 = vunpack.c.l.b16 %v1455
      %v1811 = vunpack.c.l.b16 %v1456
      %v1812 = vunpack.c.l.b16 %v1457
      %v1813 = vunpack.c.l.b16 %v1458
      %v1814 = vunpack.c.l.b16 %v1459
      %v1815 = vunpack.c.l.b16 %v1460
      %v1816 = vunpack.c.l.b16 %v1461
      %v1817 = vunpack.c.l.b16 %v1462
      %v1818 = vunpack.c.l.b16 %v1463
      %v1819 = vunpack.c.l.b16 %v1464
      %v1820 = vunpack.c.l.b16 %v1465
      %v1821 = vpack.c.b16 %v1805, %v1804
      %v1822 = vpack.c.b16 %v1807, %v1806
      %v1823 = vpack.c.b16 %v1809, %v1808
      %v1824 = vpack.c.b16 %v1811, %v1810
      %v1825 = vpack.c.b16 %v1813, %v1812
      %v1826 = vpack.c.b16 %v1815, %v1814
      %v1827 = vpack.c.b16 %v1817, %v1816
      %v1828 = vpack.c.b16 %v1819, %v1818
      %v1829 = vpack.c.b16 %v1820, %v1820
      %v1846 = vunpack.c.l.b16 %v1190
      %v1847 = vunpack.c.l.b16 %v1191
      %v1848 = vunpack.c.l.b16 %v1192
      %v1849 = vunpack.c.l.b16 %v1193
      %v1850 = vunpack.c.l.b16 %v1194
      %v1851 = vunpack.c.l.b16 %v1195
      %v1852 = vunpack.c.l.b16 %v1196
      %v1853 = vunpack.c.l.b16 %v1197
      %v1854 = vunpack.c.l.b16 %v1198
      %v1855 = vunpack.c.l.b16 %v1199
      %v1856 = vunpack.c.l.b16 %v1200
      %v1857 = vunpack.c.l.b16 %v1201
      %v1858 = vunpack.c.l.b16 %v1202
      %v1859 = vunpack.c.l.b16 %v1203
      %v1860 = vunpack.c.l.b16 %v1204
      %v1861 = vunpack.c.l.b16 %v1205
      %v1862 = vpack.c.b16 %v1847, %v1846
      %v1863 = vpack.c.b16 %v1849, %v1848
      %v1864 = vpack.c.b16 %v1851, %v1850
      %v1865 = vpack.c.b16 %v1853, %v1852
      %v1866 = vpack.c.b16 %v1855, %v1854
      %v1867 = vpack.c.b16 %v1857, %v1856
      %v1868 = vpack.c.b16 %v1859, %v1858
      %v1869 = vpack.c.b16 %v1861, %v1860
      %v1871 = vshrl.u32 %v1862, 16
      %v1873 = vrot.slane %v1871, 4
      %v1874 = vshll.u32 %v1862, 16
      %v1876 = vrot.slane %v1874, 5
      %v1877 = vor.u32 %v1873, %v1876
      %v1879 = vshrl.u32 %v1863, 16
      %v1881 = vrot.slane %v1879, 4
      %v1882 = vshll.u32 %v1863, 16
      %v1884 = vrot.slane %v1882, 5
      %v1885 = vor.u32 %v1881, %v1884
      %v1886 = vsel %vm1270, %v1877, %v1885
      %v1888 = vshrl.u32 %v1864, 16
      %v1890 = vrot.slane %v1888, 4
      %v1891 = vshll.u32 %v1864, 16
      %v1893 = vrot.slane %v1891, 5
      %v1894 = vor.u32 %v1890, %v1893
      %v1895 = vsel %vm1270, %v1885, %v1894
      %v1897 = vshrl.u32 %v1865, 16
      %v1899 = vrot.slane %v1897, 4
      %v1900 = vshll.u32 %v1865, 16
      %v1902 = vrot.slane %v1900, 5
      %v1903 = vor.u32 %v1899, %v1902
      %v1904 = vsel %vm1270, %v1894, %v1903
      %v1906 = vshrl.u32 %v1866, 16
      %v1908 = vrot.slane %v1906, 4
      %v1909 = vshll.u32 %v1866, 16
      %v1911 = vrot.slane %v1909, 5
      %v1912 = vor.u32 %v1908, %v1911
      %v1913 = vsel %vm1270, %v1903, %v1912
      %v1915 = vshrl.u32 %v1867, 16
      %v1917 = vrot.slane %v1915, 4
      %v1918 = vshll.u32 %v1867, 16
      %v1920 = vrot.slane %v1918, 5
      %v1921 = vor.u32 %v1917, %v1920
      %v1922 = vsel %vm1270, %v1912, %v1921
      %v1924 = vshrl.u32 %v1868, 16
      %v1926 = vrot.slane %v1924, 4
      %v1927 = vshll.u32 %v1868, 16
      %v1929 = vrot.slane %v1927, 5
      %v1930 = vor.u32 %v1926, %v1929
      %v1931 = vsel %vm1270, %v1921, %v1930
      %v1933 = vshrl.u32 %v1869, 16
      %v1935 = vrot.slane %v1933, 4
      %v1936 = vshll.u32 %v1869, 16
      %v1938 = vrot.slane %v1936, 5
      %v1939 = vor.u32 %v1935, %v1938
      %v1940 = vsel %vm1270, %v1930, %v1939
      %1941 = vrot.lane.b32.xlu0 %v1877, 32
      %v1942 = vpop.permute.xlu0 %1941
      %1943 = vrot.lane.b32.xlu0 %v1886, 32
      %v1944 = vpop.permute.xlu0 %1943
      %1945 = vrot.lane.b32.xlu0 %v1895, 32
      %v1946 = vpop.permute.xlu0 %1945
      %1947 = vrot.lane.b32.xlu0 %v1904, 32
      %v1948 = vpop.permute.xlu0 %1947
      %1949 = vrot.lane.b32.xlu0 %v1913, 32
      %v1950 = vpop.permute.xlu0 %1949
      %1951 = vrot.lane.b32.xlu0 %v1922, 32
      %v1952 = vpop.permute.xlu0 %1951
      %1953 = vrot.lane.b32.xlu0 %v1931, 32
      %v1954 = vpop.permute.xlu0 %1953
      %1955 = vrot.lane.b32.xlu0 %v1940, 32
      %v1956 = vpop.permute.xlu0 %1955
      %1957 = vrot.lane.b32.xlu0 %v1939, 32
      %v1958 = vpop.permute.xlu0 %1957
      %v1976 = vunpack.c.l.b16 %v1694
      %v1977 = vunpack.c.l.b16 %v1695
      %v1978 = vunpack.c.l.b16 %v1696
      %v1979 = vunpack.c.l.b16 %v1697
      %v1980 = vunpack.c.l.b16 %v1698
      %v1981 = vunpack.c.l.b16 %v1699
      %v1982 = vunpack.c.l.b16 %v1700
      %v1983 = vunpack.c.l.b16 %v1701
      %v1984 = vunpack.c.l.b16 %v1702
      %v1985 = vunpack.c.l.b16 %v1703
      %v1986 = vunpack.c.l.b16 %v1704
      %v1987 = vunpack.c.l.b16 %v1705
      %v1988 = vunpack.c.l.b16 %v1706
      %v1989 = vunpack.c.l.b16 %v1707
      %v1990 = vunpack.c.l.b16 %v1708
      %v1991 = vunpack.c.l.b16 %v1709
      %v1992 = vunpack.c.l.b16 %v1710
      %v1993 = vpack.c.b16 %v1977, %v1976
      %v1994 = vpack.c.b16 %v1979, %v1978
      %v1995 = vpack.c.b16 %v1981, %v1980
      %v1996 = vpack.c.b16 %v1983, %v1982
      %v1997 = vpack.c.b16 %v1985, %v1984
      %v1998 = vpack.c.b16 %v1987, %v1986
      %v1999 = vpack.c.b16 %v1989, %v1988
      %v2000 = vpack.c.b16 %v1991, %v1990
      %v2001 = vpack.c.b16 %v1992, %v1992
      %vm2002 = vcmask 1042432
      %v2003 = vrot.slane %v1993, 5
      %v2004 = vrot.slane %v1994, 5
      %v2005 = vsel %vm2002, %v2003, %v2004
      %v2006 = vrot.slane %v1995, 5
      %v2007 = vsel %vm2002, %v2004, %v2006
      %v2008 = vrot.slane %v1996, 5
      %v2009 = vsel %vm2002, %v2006, %v2008
      %v2010 = vrot.slane %v1997, 5
      %v2011 = vsel %vm2002, %v2008, %v2010
      %v2012 = vrot.slane %v1998, 5
      %v2013 = vsel %vm2002, %v2010, %v2012
      %v2014 = vrot.slane %v1999, 5
      %v2015 = vsel %vm2002, %v2012, %v2014
      %v2016 = vrot.slane %v2000, 5
      %v2017 = vsel %vm2002, %v2014, %v2016
      %v2018 = vrot.slane %v2001, 5
      %v2019 = vsel %vm2002, %v2016, %v2018
      %2020 = vrot.lane.b32.xlu0 %v2003, 64
      %v2021 = vpop.permute.xlu0 %2020
      %2022 = vrot.lane.b32.xlu0 %v2005, 64
      %v2023 = vpop.permute.xlu0 %2022
      %2024 = vrot.lane.b32.xlu0 %v2007, 64
      %v2025 = vpop.permute.xlu0 %2024
      %2026 = vrot.lane.b32.xlu0 %v2009, 64
      %v2027 = vpop.permute.xlu0 %2026
      %2028 = vrot.lane.b32.xlu0 %v2011, 64
      %v2029 = vpop.permute.xlu0 %2028
      %2030 = vrot.lane.b32.xlu0 %v2013, 64
      %v2031 = vpop.permute.xlu0 %2030
      %2032 = vrot.lane.b32.xlu0 %v2015, 64
      %v2033 = vpop.permute.xlu0 %2032
      %2034 = vrot.lane.b32.xlu0 %v2017, 64
      %v2035 = vpop.permute.xlu0 %2034
      %2036 = vrot.lane.b32.xlu0 %v2019, 64
      %v2037 = vpop.permute.xlu0 %2036
      %v2055 = vunpack.c.l.b16 %v1714
      %v2056 = vunpack.c.l.b16 %v1715
      %v2057 = vunpack.c.l.b16 %v1716
      %v2058 = vunpack.c.l.b16 %v1717
      %v2059 = vunpack.c.l.b16 %v1718
      %v2060 = vunpack.c.l.b16 %v1719
      %v2061 = vunpack.c.l.b16 %v1720
      %v2062 = vunpack.c.l.b16 %v1721
      %v2063 = vunpack.c.l.b16 %v1722
      %v2064 = vunpack.c.l.b16 %v1723
      %v2065 = vunpack.c.l.b16 %v1724
      %v2066 = vunpack.c.l.b16 %v1725
      %v2067 = vunpack.c.l.b16 %v1726
      %v2068 = vunpack.c.l.b16 %v1727
      %v2069 = vunpack.c.l.b16 %v1728
      %v2070 = vunpack.c.l.b16 %v1729
      %v2071 = vunpack.c.l.b16 %v1730
      %v2072 = vpack.c.b16 %v2056, %v2055
      %v2073 = vpack.c.b16 %v2058, %v2057
      %v2074 = vpack.c.b16 %v2060, %v2059
      %v2075 = vpack.c.b16 %v2062, %v2061
      %v2076 = vpack.c.b16 %v2064, %v2063
      %v2077 = vpack.c.b16 %v2066, %v2065
      %v2078 = vpack.c.b16 %v2068, %v2067
      %v2079 = vpack.c.b16 %v2070, %v2069
      %v2080 = vpack.c.b16 %v2071, %v2071
      %2081 = vrot.lane.b32.xlu0 %v2072, 96
      %v2082 = vpop.permute.xlu0 %2081
      %2083 = vrot.lane.b32.xlu0 %v2073, 96
      %v2084 = vpop.permute.xlu0 %2083
      %2085 = vrot.lane.b32.xlu0 %v2074, 96
      %v2086 = vpop.permute.xlu0 %2085
      %2087 = vrot.lane.b32.xlu0 %v2075, 96
      %v2088 = vpop.permute.xlu0 %2087
      %2089 = vrot.lane.b32.xlu0 %v2076, 96
      %v2090 = vpop.permute.xlu0 %2089
      %2091 = vrot.lane.b32.xlu0 %v2077, 96
      %v2092 = vpop.permute.xlu0 %2091
      %2093 = vrot.lane.b32.xlu0 %v2078, 96
      %v2094 = vpop.permute.xlu0 %2093
      %2095 = vrot.lane.b32.xlu0 %v2079, 96
      %v2096 = vpop.permute.xlu0 %2095
      %2097 = vrot.lane.b32.xlu0 %v2080, 96
      %v2098 = vpop.permute.xlu0 %2097
      %v2101 = vunpack.c.l.b16 %v1712
      %v2102 = vunpack.c.l.b16 %v1713
      %v2103 = vpack.c.b16 %v2102, %v2101
      %v2105 = vshrl.u32 %v2103, 16
      %v2107 = vrot.slane %v2105, 4
      %v2108 = vshll.u32 %v2103, 16
      %v2110 = vrot.slane %v2108, 5
      %v2111 = vor.u32 %v2107, %v2110
      %v2112 = vsel %vm1270, %v1939, %v2111
      %v2130 = vunpack.c.l.b16 %v1732
      %v2131 = vunpack.c.l.b16 %v1733
      %v2132 = vunpack.c.l.b16 %v1734
      %v2133 = vunpack.c.l.b16 %v1735
      %v2134 = vunpack.c.l.b16 %v1736
      %v2135 = vunpack.c.l.b16 %v1737
      %v2136 = vunpack.c.l.b16 %v1738
      %v2137 = vunpack.c.l.b16 %v1739
      %v2138 = vunpack.c.l.b16 %v1740
      %v2139 = vunpack.c.l.b16 %v1741
      %v2140 = vunpack.c.l.b16 %v1742
      %v2141 = vunpack.c.l.b16 %v1743
      %v2142 = vunpack.c.l.b16 %v1744
      %v2143 = vunpack.c.l.b16 %v1745
      %v2144 = vunpack.c.l.b16 %v1746
      %v2145 = vunpack.c.l.b16 %v1747
      %v2146 = vunpack.c.l.b16 %v1748
      %v2147 = vpack.c.b16 %v2131, %v2130
      %v2148 = vpack.c.b16 %v2133, %v2132
      %v2149 = vpack.c.b16 %v2135, %v2134
      %v2150 = vpack.c.b16 %v2137, %v2136
      %v2151 = vpack.c.b16 %v2139, %v2138
      %v2152 = vpack.c.b16 %v2141, %v2140
      %v2153 = vpack.c.b16 %v2143, %v2142
      %v2154 = vpack.c.b16 %v2145, %v2144
      %v2155 = vpack.c.b16 %v2146, %v2146
      %v2156 = vrot.slane %v2147, 5
      %v2157 = vrot.slane %v2148, 5
      %v2158 = vsel %vm2002, %v2156, %v2157
      %v2159 = vrot.slane %v2149, 5
      %v2160 = vsel %vm2002, %v2157, %v2159
      %v2161 = vrot.slane %v2150, 5
      %v2162 = vsel %vm2002, %v2159, %v2161
      %v2163 = vrot.slane %v2151, 5
      %v2164 = vsel %vm2002, %v2161, %v2163
      %v2165 = vrot.slane %v2152, 5
      %v2166 = vsel %vm2002, %v2163, %v2165
      %v2167 = vrot.slane %v2153, 5
      %v2168 = vsel %vm2002, %v2165, %v2167
      %v2169 = vrot.slane %v2154, 5
      %v2170 = vsel %vm2002, %v2167, %v2169
      %v2171 = vrot.slane %v2155, 5
      %v2172 = vsel %vm2002, %v2169, %v2171
      %2173 = vrot.lane.b32.xlu0 %v2156, 32
      %v2174 = vpop.permute.xlu0 %2173
      %2175 = vrot.lane.b32.xlu0 %v2158, 32
      %v2176 = vpop.permute.xlu0 %2175
      %2177 = vrot.lane.b32.xlu0 %v2160, 32
      %v2178 = vpop.permute.xlu0 %2177
      %2179 = vrot.lane.b32.xlu0 %v2162, 32
      %v2180 = vpop.permute.xlu0 %2179
      %2181 = vrot.lane.b32.xlu0 %v2164, 32
      %v2182 = vpop.permute.xlu0 %2181
      %2183 = vrot.lane.b32.xlu0 %v2166, 32
      %v2184 = vpop.permute.xlu0 %2183
      %2185 = vrot.lane.b32.xlu0 %v2168, 32
      %v2186 = vpop.permute.xlu0 %2185
      %2187 = vrot.lane.b32.xlu0 %v2170, 32
      %v2188 = vpop.permute.xlu0 %2187
      %2189 = vrot.lane.b32.xlu0 %v2172, 32
      %v2190 = vpop.permute.xlu0 %2189
      %v2208 = vunpack.c.l.b16 %v1752
      %v2209 = vunpack.c.l.b16 %v1753
      %v2210 = vunpack.c.l.b16 %v1754
      %v2211 = vunpack.c.l.b16 %v1755
      %v2212 = vunpack.c.l.b16 %v1756
      %v2213 = vunpack.c.l.b16 %v1757
      %v2214 = vunpack.c.l.b16 %v1758
      %v2215 = vunpack.c.l.b16 %v1759
      %v2216 = vunpack.c.l.b16 %v1760
      %v2217 = vunpack.c.l.b16 %v1761
      %v2218 = vunpack.c.l.b16 %v1762
      %v2219 = vunpack.c.l.b16 %v1763
      %v2220 = vunpack.c.l.b16 %v1764
      %v2221 = vunpack.c.l.b16 %v1765
      %v2222 = vunpack.c.l.b16 %v1766
      %v2223 = vunpack.c.l.b16 %v1767
      %v2224 = vunpack.c.l.b16 %v1768
      %v2225 = vpack.c.b16 %v2209, %v2208
      %v2226 = vpack.c.b16 %v2211, %v2210
      %v2227 = vpack.c.b16 %v2213, %v2212
      %v2228 = vpack.c.b16 %v2215, %v2214
      %v2229 = vpack.c.b16 %v2217, %v2216
      %v2230 = vpack.c.b16 %v2219, %v2218
      %v2231 = vpack.c.b16 %v2221, %v2220
      %v2232 = vpack.c.b16 %v2223, %v2222
      %v2233 = vpack.c.b16 %v2224, %v2224
      %2234 = vrot.lane.b32.xlu0 %v2225, 64
      %v2235 = vpop.permute.xlu0 %2234
      %2236 = vrot.lane.b32.xlu0 %v2226, 64
      %v2237 = vpop.permute.xlu0 %2236
      %2238 = vrot.lane.b32.xlu0 %v2227, 64
      %v2239 = vpop.permute.xlu0 %2238
      %2240 = vrot.lane.b32.xlu0 %v2228, 64
      %v2241 = vpop.permute.xlu0 %2240
      %2242 = vrot.lane.b32.xlu0 %v2229, 64
      %v2243 = vpop.permute.xlu0 %2242
      %2244 = vrot.lane.b32.xlu0 %v2230, 64
      %v2245 = vpop.permute.xlu0 %2244
      %2246 = vrot.lane.b32.xlu0 %v2231, 64
      %v2247 = vpop.permute.xlu0 %2246
      %2248 = vrot.lane.b32.xlu0 %v2232, 64
      %v2249 = vpop.permute.xlu0 %2248
      %2250 = vrot.lane.b32.xlu0 %v2233, 64
      %v2251 = vpop.permute.xlu0 %2250
      %v2254 = vunpack.c.l.b16 %v1750
      %v2255 = vunpack.c.l.b16 %v1751
      %v2256 = vpack.c.b16 %v2255, %v2254
      %v2258 = vshrl.u32 %v2256, 16
      %v2260 = vrot.slane %v2258, 4
      %v2261 = vshll.u32 %v2256, 16
      %v2263 = vrot.slane %v2261, 5
      %v2264 = vor.u32 %v2260, %v2263
      %v2265 = vsel %vm1270, %v2111, %v2264
      %2266 = vrot.lane.b32.xlu0 %v1894, 96
      %v2267 = vpop.permute.xlu0 %2266
      %2268 = vrot.lane.b32.xlu0 %v1904, 96
      %v2269 = vpop.permute.xlu0 %2268
      %2270 = vrot.lane.b32.xlu0 %v1913, 96
      %v2271 = vpop.permute.xlu0 %2270
      %2272 = vrot.lane.b32.xlu0 %v1922, 96
      %v2273 = vpop.permute.xlu0 %2272
      %2274 = vrot.lane.b32.xlu0 %v1931, 96
      %v2275 = vpop.permute.xlu0 %2274
      %2276 = vrot.lane.b32.xlu0 %v1940, 96
      %v2277 = vpop.permute.xlu0 %2276
      %2278 = vrot.lane.b32.xlu0 %v2112, 96
      %v2279 = vpop.permute.xlu0 %2278
      %2280 = vrot.lane.b32.xlu0 %v2265, 96
      %v2281 = vpop.permute.xlu0 %2280
      %2282 = vrot.lane.b32.xlu0 %v2264, 96
      %v2283 = vpop.permute.xlu0 %2282
      %v2301 = vunpack.c.l.b16 %v1770
      %v2302 = vunpack.c.l.b16 %v1771
      %v2303 = vunpack.c.l.b16 %v1772
      %v2304 = vunpack.c.l.b16 %v1773
      %v2305 = vunpack.c.l.b16 %v1774
      %v2306 = vunpack.c.l.b16 %v1775
      %v2307 = vunpack.c.l.b16 %v1776
      %v2308 = vunpack.c.l.b16 %v1777
      %v2309 = vunpack.c.l.b16 %v1778
      %v2310 = vunpack.c.l.b16 %v1779
      %v2311 = vunpack.c.l.b16 %v1780
      %v2312 = vunpack.c.l.b16 %v1781
      %v2313 = vunpack.c.l.b16 %v1782
      %v2314 = vunpack.c.l.b16 %v1783
      %v2315 = vunpack.c.l.b16 %v1784
      %v2316 = vunpack.c.l.b16 %v1785
      %v2317 = vunpack.c.l.b16 %v1786
      %v2318 = vpack.c.b16 %v2302, %v2301
      %v2319 = vpack.c.b16 %v2304, %v2303
      %v2320 = vpack.c.b16 %v2306, %v2305
      %v2321 = vpack.c.b16 %v2308, %v2307
      %v2322 = vpack.c.b16 %v2310, %v2309
      %v2323 = vpack.c.b16 %v2312, %v2311
      %v2324 = vpack.c.b16 %v2314, %v2313
      %v2325 = vpack.c.b16 %v2316, %v2315
      %v2326 = vpack.c.b16 %v2317, %v2317
      %v2327 = vrot.slane %v2318, 5
      %v2328 = vrot.slane %v2319, 5
      %v2329 = vsel %vm2002, %v2327, %v2328
      %v2330 = vrot.slane %v2320, 5
      %v2331 = vsel %vm2002, %v2328, %v2330
      %v2332 = vrot.slane %v2321, 5
      %v2333 = vsel %vm2002, %v2330, %v2332
      %v2334 = vrot.slane %v2322, 5
      %v2335 = vsel %vm2002, %v2332, %v2334
      %v2336 = vrot.slane %v2323, 5
      %v2337 = vsel %vm2002, %v2334, %v2336
      %v2338 = vrot.slane %v2324, 5
      %v2339 = vsel %vm2002, %v2336, %v2338
      %v2340 = vrot.slane %v2325, 5
      %v2341 = vsel %vm2002, %v2338, %v2340
      %v2342 = vrot.slane %v2326, 5
      %v2343 = vsel %vm2002, %v2340, %v2342
      %v2346 = vsel %vm671, %v1821, %v1942
      %v2349 = vsel %vm671, %v1822, %v1944
      %v2352 = vsel %vm671, %v1823, %v1946
      %v2355 = vsel %vm671, %v1824, %v1948
      %v2358 = vsel %vm671, %v1825, %v1950
      %v2361 = vsel %vm671, %v1826, %v1952
      %v2364 = vsel %vm671, %v1827, %v1954
      %v2367 = vsel %vm671, %v1828, %v1956
      %v2370 = vsel %vm671, %v1829, %v1958
      %vm2371 = vcmask 523264
      %v2373 = vsel %vm2371, %v2346, %v2021
      %v2375 = vsel %vm2371, %v2349, %v2023
      %v2377 = vsel %vm2371, %v2352, %v2025
      %v2379 = vsel %vm2371, %v2355, %v2027
      %v2381 = vsel %vm2371, %v2358, %v2029
      %v2383 = vsel %vm2371, %v2361, %v2031
      %v2385 = vsel %vm2371, %v2364, %v2033
      %v2387 = vsel %vm2371, %v2367, %v2035
      %v2389 = vsel %vm2371, %v2370, %v2037
      %vm2390 = vcmask 785408
      %v2392 = vsel %vm2390, %v2373, %v2082
      %v2394 = vsel %vm2390, %v2375, %v2084
      %v2396 = vsel %vm2390, %v2377, %v2086
      %v2398 = vsel %vm2390, %v2379, %v2088
      %v2400 = vsel %vm2390, %v2381, %v2090
      %v2402 = vsel %vm2390, %v2383, %v2092
      %v2404 = vsel %vm2390, %v2385, %v2094
      %v2406 = vsel %vm2390, %v2387, %v2096
      %v2408 = vsel %vm2390, %v2389, %v2098
      %v2411 = vsel %vm671, %v1885, %v2174
      %v2414 = vsel %vm671, %v1895, %v2176
      %v2417 = vsel %vm671, %v1904, %v2178
      %v2420 = vsel %vm671, %v1913, %v2180
      %v2423 = vsel %vm671, %v1922, %v2182
      %v2426 = vsel %vm671, %v1931, %v2184
      %v2429 = vsel %vm671, %v1940, %v2186
      %v2432 = vsel %vm671, %v2112, %v2188
      %v2435 = vsel %vm671, %v2111, %v2190
      %v2437 = vsel %vm2371, %v2411, %v2235
      %v2439 = vsel %vm2371, %v2414, %v2237
      %v2441 = vsel %vm2371, %v2417, %v2239
      %v2443 = vsel %vm2371, %v2420, %v2241
      %v2445 = vsel %vm2371, %v2423, %v2243
      %v2447 = vsel %vm2371, %v2426, %v2245
      %v2449 = vsel %vm2371, %v2429, %v2247
      %v2451 = vsel %vm2371, %v2432, %v2249
      %v2453 = vsel %vm2371, %v2435, %v2251
      %v2455 = vsel %vm2390, %v2437, %v2267
      %v2457 = vsel %vm2390, %v2439, %v2269
      %v2459 = vsel %vm2390, %v2441, %v2271
      %v2461 = vsel %vm2390, %v2443, %v2273
      %v2463 = vsel %vm2390, %v2445, %v2275
      %v2465 = vsel %vm2390, %v2447, %v2277
      %v2467 = vsel %vm2390, %v2449, %v2279
      %v2469 = vsel %vm2390, %v2451, %v2281
      %v2471 = vsel %vm2390, %v2453, %v2283
      %v2472 = vld [vmem:[%s5] sm:$0xf]
      %v2473 = vld [vmem:[%s5 + $0x4] sm:$0xf]
      %v2474 = vld [vmem:[%s5 + $0x8] sm:$0xf]
      %v2475 = vld [vmem:[%s5 + $0xc] sm:$0xf]
      %v2476 = vld [vmem:[%s5 + $0x10] sm:$0xf]
      %v2477 = vld [vmem:[%s5 + $0x14] sm:$0xf]
      %v2478 = vld [vmem:[%s5 + $0x18] sm:$0xf]
      %v2479 = vld [vmem:[%s5 + $0x1c] sm:$0xf]
      %v2480 = vld [vmem:[%s5 + $0x20] sm:$0xf]
      %v2481 = vld [vmem:[%s5 + $0x24] sm:$0xf]
      %v2482 = vld [vmem:[%s5 + $0x28] sm:$0xf]
      %v2483 = vld [vmem:[%s5 + $0x2c] sm:$0xf]
      %v2484 = vld [vmem:[%s5 + $0x30] sm:$0xf]
      %v2485 = vld [vmem:[%s5 + $0x34] sm:$0xf]
      %v2486 = vld [vmem:[%s5 + $0x38] sm:$0xf]
      %v2487 = vld [vmem:[%s5 + $0x3c] sm:$0xf]
      %v2488 = vld [vmem:[%s5 + $0x40] sm:$0xf]
      %v2489 = vld [vmem:[%s5 + $0x44] sm:$0xf]
      %v2490 = vld [vmem:[%s5 + $0x48] sm:$0xf]
      %v2491 = vld [vmem:[%s5 + $0x4c] sm:$0xf]
      %v2492 = vld [vmem:[%s5 + $0x50] sm:$0xf]
      %v2493 = vld [vmem:[%s5 + $0x54] sm:$0xf]
      %v2494 = vld [vmem:[%s5 + $0x58] sm:$0xf]
      %v2495 = vld [vmem:[%s5 + $0x5c] sm:$0xf]
      %v2496 = vld [vmem:[%s5 + $0x60] sm:$0xf]
      %v2497 = vld [vmem:[%s5 + $0x64] sm:$0xf]
      %v2498 = vld [vmem:[%s5 + $0x68] sm:$0xf]
      %v2499 = vld [vmem:[%s5 + $0x6c] sm:$0xf]
      %v2500 = vld [vmem:[%s5 + $0x70] sm:$0xf]
      %v2501 = vld [vmem:[%s5 + $0x74] sm:$0xf]
      %v2502 = vld [vmem:[%s5 + $0x78] sm:$0xf]
      %v2503 = vld [vmem:[%s5 + $0x7c] sm:$0xf]
      %v2504 = vld [vmem:[%s5 + $0x80] sm:$0xf]
      %v2505 = vld [vmem:[%s5 + $0x84] sm:$0xf]
      %v2506 = vld [vmem:[%s5 + $0x88] sm:$0xf]
      %v2507 = vld [vmem:[%s5 + $0x8c] sm:$0xf]
      %v2508 = vld [vmem:[%s6] sm:$0x1]
      %v2510 = vlaneseq
      %v2511 = vshrl.u32 %v2510, 7
      %v2512 = vsub.s32 0, %v2511
      %v2513 = vrot.slane %v2508, %v2512
      %vm2515 = vsmask.f32 4352
      %v2516 = vshrl.u32 %v2392, 16
      %v2518 = vrot.slane %v2516, 3
      %v2519 = vshll.u32 %v2392, 16
      %v2521 = vrot.slane %v2519, 4
      %v2522 = vor.u32 %v2518, %v2521
      %v2523 = vshrl.u32 %v2394, 16
      %v2525 = vrot.slane %v2523, 3
      %v2526 = vshll.u32 %v2394, 16
      %v2528 = vrot.slane %v2526, 4
      %v2529 = vor.u32 %v2525, %v2528
      %v2530 = vsel %vm2515, %v2522, %v2529
      %v2531 = vshrl.u32 %v2455, 16
      %v2533 = vrot.slane %v2531, 3
      %v2534 = vshll.u32 %v2455, 16
      %v2536 = vrot.slane %v2534, 4
      %v2537 = vor.u32 %v2533, %v2536
      %v2538 = vshrl.u32 %v2457, 16
      %v2540 = vrot.slane %v2538, 3
      %v2541 = vshll.u32 %v2457, 16
      %v2543 = vrot.slane %v2541, 4
      %v2544 = vor.u32 %v2540, %v2543
      %v2545 = vsel %vm2515, %v2537, %v2544
      %v2547 = vshrl.u32 %v2327, 16
      %v2549 = vrot.slane %v2547, 3
      %v2550 = vshll.u32 %v2327, 16
      %v2552 = vrot.slane %v2550, 4
      %v2553 = vor.u32 %v2549, %v2552
      %v2555 = vshrl.u32 %v2329, 16
      %v2557 = vrot.slane %v2555, 3
      %v2558 = vshll.u32 %v2329, 16
      %v2560 = vrot.slane %v2558, 4
      %v2561 = vor.u32 %v2557, %v2560
      %v2562 = vsel %vm2515, %v2553, %v2561
      %v2563 = vshrl.u32 %v2396, 16
      %v2565 = vrot.slane %v2563, 3
      %v2566 = vshll.u32 %v2396, 16
      %v2568 = vrot.slane %v2566, 4
      %v2569 = vor.u32 %v2565, %v2568
      %v2570 = vsel %vm2515, %v2529, %v2569
      %v2571 = vshrl.u32 %v2459, 16
      %v2573 = vrot.slane %v2571, 3
      %v2574 = vshll.u32 %v2459, 16
      %v2576 = vrot.slane %v2574, 4
      %v2577 = vor.u32 %v2573, %v2576
      %v2578 = vsel %vm2515, %v2544, %v2577
      %v2580 = vshrl.u32 %v2331, 16
      %v2582 = vrot.slane %v2580, 3
      %v2583 = vshll.u32 %v2331, 16
      %v2585 = vrot.slane %v2583, 4
      %v2586 = vor.u32 %v2582, %v2585
      %v2587 = vsel %vm2515, %v2561, %v2586
      %v2588 = vshrl.u32 %v2398, 16
      %v2590 = vrot.slane %v2588, 3
      %v2591 = vshll.u32 %v2398, 16
      %v2593 = vrot.slane %v2591, 4
      %v2594 = vor.u32 %v2590, %v2593
      %v2595 = vsel %vm2515, %v2569, %v2594
      %v2596 = vshrl.u32 %v2461, 16
      %v2598 = vrot.slane %v2596, 3
      %v2599 = vshll.u32 %v2461, 16
      %v2601 = vrot.slane %v2599, 4
      %v2602 = vor.u32 %v2598, %v2601
      %v2603 = vsel %vm2515, %v2577, %v2602
      %v2605 = vshrl.u32 %v2333, 16
      %v2607 = vrot.slane %v2605, 3
      %v2608 = vshll.u32 %v2333, 16
      %v2610 = vrot.slane %v2608, 4
      %v2611 = vor.u32 %v2607, %v2610
      %v2612 = vsel %vm2515, %v2586, %v2611
      %v2613 = vshrl.u32 %v2400, 16
      %v2615 = vrot.slane %v2613, 3
      %v2616 = vshll.u32 %v2400, 16
      %v2618 = vrot.slane %v2616, 4
      %v2619 = vor.u32 %v2615, %v2618
      %v2620 = vsel %vm2515, %v2594, %v2619
      %v2621 = vshrl.u32 %v2463, 16
      %v2623 = vrot.slane %v2621, 3
      %v2624 = vshll.u32 %v2463, 16
      %v2626 = vrot.slane %v2624, 4
      %v2627 = vor.u32 %v2623, %v2626
      %v2628 = vsel %vm2515, %v2602, %v2627
      %v2630 = vshrl.u32 %v2335, 16
      %v2632 = vrot.slane %v2630, 3
      %v2633 = vshll.u32 %v2335, 16
      %v2635 = vrot.slane %v2633, 4
      %v2636 = vor.u32 %v2632, %v2635
      %v2637 = vsel %vm2515, %v2611, %v2636
      %v2638 = vshrl.u32 %v2402, 16
      %v2640 = vrot.slane %v2638, 3
      %v2641 = vshll.u32 %v2402, 16
      %v2643 = vrot.slane %v2641, 4
      %v2644 = vor.u32 %v2640, %v2643
      %v2645 = vsel %vm2515, %v2619, %v2644
      %v2646 = vshrl.u32 %v2465, 16
      %v2648 = vrot.slane %v2646, 3
      %v2649 = vshll.u32 %v2465, 16
      %v2651 = vrot.slane %v2649, 4
      %v2652 = vor.u32 %v2648, %v2651
      %v2653 = vsel %vm2515, %v2627, %v2652
      %v2655 = vshrl.u32 %v2337, 16
      %v2657 = vrot.slane %v2655, 3
      %v2658 = vshll.u32 %v2337, 16
      %v2660 = vrot.slane %v2658, 4
      %v2661 = vor.u32 %v2657, %v2660
      %v2662 = vsel %vm2515, %v2636, %v2661
      %v2663 = vshrl.u32 %v2404, 16
      %v2665 = vrot.slane %v2663, 3
      %v2666 = vshll.u32 %v2404, 16
      %v2668 = vrot.slane %v2666, 4
      %v2669 = vor.u32 %v2665, %v2668
      %v2670 = vsel %vm2515, %v2644, %v2669
      %v2671 = vshrl.u32 %v2467, 16
      %v2673 = vrot.slane %v2671, 3
      %v2674 = vshll.u32 %v2467, 16
      %v2676 = vrot.slane %v2674, 4
      %v2677 = vor.u32 %v2673, %v2676
      %v2678 = vsel %vm2515, %v2652, %v2677
      %v2680 = vshrl.u32 %v2339, 16
      %v2682 = vrot.slane %v2680, 3
      %v2683 = vshll.u32 %v2339, 16
      %v2685 = vrot.slane %v2683, 4
      %v2686 = vor.u32 %v2682, %v2685
      %v2687 = vsel %vm2515, %v2661, %v2686
      %v2688 = vshrl.u32 %v2406, 16
      %v2690 = vrot.slane %v2688, 3
      %v2691 = vshll.u32 %v2406, 16
      %v2693 = vrot.slane %v2691, 4
      %v2694 = vor.u32 %v2690, %v2693
      %v2695 = vsel %vm2515, %v2669, %v2694
      %v2696 = vshrl.u32 %v2469, 16
      %v2698 = vrot.slane %v2696, 3
      %v2699 = vshll.u32 %v2469, 16
      %v2701 = vrot.slane %v2699, 4
      %v2702 = vor.u32 %v2698, %v2701
      %v2703 = vsel %vm2515, %v2677, %v2702
      %v2705 = vshrl.u32 %v2341, 16
      %v2707 = vrot.slane %v2705, 3
      %v2708 = vshll.u32 %v2341, 16
      %v2710 = vrot.slane %v2708, 4
      %v2711 = vor.u32 %v2707, %v2710
      %v2712 = vsel %vm2515, %v2686, %v2711
      %v2713 = vshrl.u32 %v2408, 16
      %v2715 = vrot.slane %v2713, 3
      %v2716 = vshll.u32 %v2408, 16
      %v2718 = vrot.slane %v2716, 4
      %v2719 = vor.u32 %v2715, %v2718
      %v2720 = vsel %vm2515, %v2694, %v2719
      %v2721 = vshrl.u32 %v2471, 16
      %v2723 = vrot.slane %v2721, 3
      %v2724 = vshll.u32 %v2471, 16
      %v2726 = vrot.slane %v2724, 4
      %v2727 = vor.u32 %v2723, %v2726
      %v2728 = vsel %vm2515, %v2702, %v2727
      %v2730 = vshrl.u32 %v2343, 16
      %v2732 = vrot.slane %v2730, 3
      %v2733 = vshll.u32 %v2343, 16
      %v2735 = vrot.slane %v2733, 4
      %v2736 = vor.u32 %v2732, %v2735
      %v2737 = vsel %vm2515, %v2711, %v2736
      %v2790 = vunpack.c.l.b16 %v2472
      %v2791 = vunpack.c.l.b16 %v2473
      %v2792 = vunpack.c.l.b16 %v2474
      %v2793 = vunpack.c.l.b16 %v2475
      %v2794 = vunpack.c.l.b16 %v2476
      %v2795 = vunpack.c.l.b16 %v2477
      %v2796 = vunpack.c.l.b16 %v2478
      %v2797 = vunpack.c.l.b16 %v2479
      %v2798 = vunpack.c.l.b16 %v2480
      %v2799 = vunpack.c.l.b16 %v2481
      %v2800 = vunpack.c.l.b16 %v2482
      %v2801 = vunpack.c.l.b16 %v2483
      %v2802 = vunpack.c.l.b16 %v2484
      %v2803 = vunpack.c.l.b16 %v2485
      %v2804 = vunpack.c.l.b16 %v2486
      %v2805 = vunpack.c.l.b16 %v2487
      %v2806 = vunpack.c.l.b16 %v2488
      %v2807 = vunpack.c.l.b16 %v2489
      %v2808 = vunpack.c.l.b16 %v2490
      %v2809 = vunpack.c.l.b16 %v2491
      %v2810 = vunpack.c.l.b16 %v2492
      %v2811 = vunpack.c.l.b16 %v2493
      %v2812 = vunpack.c.l.b16 %v2494
      %v2813 = vunpack.c.l.b16 %v2495
      %v2814 = vunpack.c.l.b16 %v2496
      %v2815 = vunpack.c.l.b16 %v2497
      %v2816 = vunpack.c.l.b16 %v2498
      %v2817 = vunpack.c.l.b16 %v2499
      %v2818 = vunpack.c.l.b16 %v2500
      %v2819 = vunpack.c.l.b16 %v2501
      %v2820 = vunpack.c.l.b16 %v2502
      %v2821 = vunpack.c.l.b16 %v2503
      %v2822 = vunpack.c.l.b16 %v2504
      %v2823 = vunpack.c.l.b16 %v2505
      %v2824 = vunpack.c.l.b16 %v2506
      %v2825 = vunpack.c.l.b16 %v2507
      %v2826 = vpack.c.b16 %v2791, %v2790
      %v2827 = vpack.c.b16 %v2793, %v2792
      %v2828 = vpack.c.b16 %v2795, %v2794
      %v2829 = vpack.c.b16 %v2797, %v2796
      %v2830 = vpack.c.b16 %v2799, %v2798
      %v2831 = vpack.c.b16 %v2801, %v2800
      %v2832 = vpack.c.b16 %v2803, %v2802
      %v2833 = vpack.c.b16 %v2805, %v2804
      %v2834 = vpack.c.b16 %v2807, %v2806
      %v2835 = vpack.c.b16 %v2809, %v2808
      %v2836 = vpack.c.b16 %v2811, %v2810
      %v2837 = vpack.c.b16 %v2813, %v2812
      %v2838 = vpack.c.b16 %v2815, %v2814
      %v2839 = vpack.c.b16 %v2817, %v2816
      %v2840 = vpack.c.b16 %v2819, %v2818
      %v2841 = vpack.c.b16 %v2821, %v2820
      %v2842 = vpack.c.b16 %v2823, %v2822
      %v2843 = vpack.c.b16 %v2825, %v2824
      %v2863 = vsel %vm671, %v2562, 0
      %v2866 = vsel %vm671, %v2587, 0
      %v2869 = vsel %vm671, %v2612, 0
      %v2872 = vsel %vm671, %v2637, 0
      %v2875 = vsel %vm671, %v2662, 0
      %v2878 = vsel %vm671, %v2687, 0
      %v2881 = vsel %vm671, %v2712, 0
      %v2884 = vsel %vm671, %v2737, 0
      %2886 = vmatprep.subr.bf16.mxu0 0
      %2887 = vmatpush1.bf16.msra.mxu0 %v2833
      %2888 = vmatprep.subr.bf16.mxu0 0
      %2889 = vmatpush1.bf16.msra.mxu0 %v2832
      %2890 = vmatprep.subr.bf16.mxu0 0
      %2891 = vmatpush1.bf16.msra.mxu0 %v2831
      %2892 = vmatprep.subr.bf16.mxu0 0
      %2893 = vmatpush1.bf16.msra.mxu0 %v2830
      %2894 = vmatprep.subr.bf16.mxu0 0
      %2895 = vmatpush1.bf16.msra.mxu0 %v2829
      %2896 = vmatprep.subr.bf16.mxu0 0
      %2897 = vmatpush1.bf16.msra.mxu0 %v2828
      %2898 = vmatprep.subr.bf16.mxu0 0
      %2899 = vmatpush1.bf16.msra.mxu0 %v2827
      %2900 = vmatprep.subr.bf16.mxu0 0
      %2901 = vmatpush1.bf16.msra.mxu0 %v2826
      %2902 = vmatprep.subr.bf16.mxu0 0
      %2903 = vmatpush2.bf16.msra.mxu0 %v2841
      %2904 = vmatprep.subr.bf16.mxu0 0
      %2905 = vmatpush2.bf16.msra.mxu0 %v2840
      %2906 = vmatprep.subr.bf16.mxu0 0
      %2907 = vmatpush2.bf16.msra.mxu0 %v2839
      %2908 = vmatprep.subr.bf16.mxu0 0
      %2909 = vmatpush2.bf16.msra.mxu0 %v2838
      %2910 = vmatprep.subr.bf16.mxu0 0
      %2911 = vmatpush2.bf16.msra.mxu0 %v2837
      %2912 = vmatprep.subr.bf16.mxu0 0
      %2913 = vmatpush2.bf16.msra.mxu0 %v2836
      %2914 = vmatprep.subr.bf16.mxu0 0
      %2915 = vmatpush2.bf16.msra.mxu0 %v2835
      %2916 = vmatprep.subr.bf16.mxu0 0
      %2917 = vmatpush2.bf16.msra.mxu0 %v2834
      %2918 = vmatprep.mubr.bf16.mxu0 %v2545
      %2919 = vmatmul.mubr.bf16.gmra.mxu0 %v2530
      %v2920 = vpop.f32.mrf.mxu0
      %v2921 = vadd.f32 %v2513, %v2920
      %v2922 = vpop.f32.mrf.mxu0
      %v2923 = vpop.f32.mrf.mxu0
      %v2924 = vadd.f32 %v2513, %v2923
      %v2925 = vpop.f32.mrf.mxu0
      %2926 = vmatprep.mubr.bf16.mxu0 %v2578
      %2927 = vmatmul.mubr.bf16.gmra.mxu0 %v2570
      %v2928 = vpop.f32.mrf.mxu0
      %v2929 = vadd.f32 %v2513, %v2928
      %v2930 = vpop.f32.mrf.mxu0
      %v2931 = vpop.f32.mrf.mxu0
      %v2932 = vadd.f32 %v2513, %v2931
      %v2933 = vpop.f32.mrf.mxu0
      %2934 = vmatprep.mubr.bf16.mxu0 %v2603
      %2935 = vmatmul.mubr.bf16.gmra.mxu0 %v2595
      %v2936 = vpop.f32.mrf.mxu0
      %v2937 = vadd.f32 %v2513, %v2936
      %v2938 = vpop.f32.mrf.mxu0
      %v2939 = vpop.f32.mrf.mxu0
      %v2940 = vadd.f32 %v2513, %v2939
      %v2941 = vpop.f32.mrf.mxu0
      %2942 = vmatprep.mubr.bf16.mxu0 %v2628
      %2943 = vmatmul.mubr.bf16.gmra.mxu0 %v2620
      %v2944 = vpop.f32.mrf.mxu0
      %v2945 = vadd.f32 %v2513, %v2944
      %v2946 = vpop.f32.mrf.mxu0
      %v2947 = vpop.f32.mrf.mxu0
      %v2948 = vadd.f32 %v2513, %v2947
      %v2949 = vpop.f32.mrf.mxu0
      %2950 = vmatprep.mubr.bf16.mxu0 %v2653
      %2951 = vmatmul.mubr.bf16.gmra.mxu0 %v2645
      %v2952 = vpop.f32.mrf.mxu0
      %v2953 = vadd.f32 %v2513, %v2952
      %v2954 = vpop.f32.mrf.mxu0
      %v2955 = vpop.f32.mrf.mxu0
      %v2956 = vadd.f32 %v2513, %v2955
      %v2957 = vpop.f32.mrf.mxu0
      %2958 = vmatprep.mubr.bf16.mxu0 %v2678
      %2959 = vmatmul.mubr.bf16.gmra.mxu0 %v2670
      %v2960 = vpop.f32.mrf.mxu0
      %v2961 = vadd.f32 %v2513, %v2960
      %v2962 = vpop.f32.mrf.mxu0
      %v2963 = vpop.f32.mrf.mxu0
      %v2964 = vadd.f32 %v2513, %v2963
      %v2965 = vpop.f32.mrf.mxu0
      %2966 = vmatprep.mubr.bf16.mxu0 %v2703
      %2967 = vmatmul.mubr.bf16.gmra.mxu0 %v2695
      %v2968 = vpop.f32.mrf.mxu0
      %v2969 = vadd.f32 %v2513, %v2968
      %v2970 = vpop.f32.mrf.mxu0
      %v2971 = vpop.f32.mrf.mxu0
      %v2972 = vadd.f32 %v2513, %v2971
      %v2973 = vpop.f32.mrf.mxu0
      %2974 = vmatprep.mubr.bf16.mxu0 %v2728
      %2975 = vmatmul.mubr.bf16.gmra.mxu0 %v2720
      %v2976 = vpop.f32.mrf.mxu0
      %v2977 = vadd.f32 %v2513, %v2976
      %v2978 = vpop.f32.mrf.mxu0
      %v2979 = vpop.f32.mrf.mxu0
      %v2980 = vadd.f32 %v2513, %v2979
      %v2981 = vpop.f32.mrf.mxu0
      %2982 = vdwg.mxu0
      %2983 = vmatprep.subr.bf16.mxu0 0
      %2984 = vmatpush1.bf16.msra.mxu0 0
      %2985 = vmatprep.subr.bf16.mxu0 0
      %2986 = vmatpush1.bf16.msra.mxu0 0
      %2987 = vmatprep.subr.bf16.mxu0 0
      %2988 = vmatpush1.bf16.msra.mxu0 0
      %2989 = vmatprep.subr.bf16.mxu0 0
      %2990 = vmatpush1.bf16.msra.mxu0 0
      %2991 = vmatprep.subr.bf16.mxu0 0
      %2992 = vmatpush1.bf16.msra.mxu0 0
      %2993 = vmatprep.subr.bf16.mxu0 0
      %2994 = vmatpush1.bf16.msra.mxu0 0
      %2995 = vmatprep.subr.bf16.mxu0 0
      %2996 = vmatpush1.bf16.msra.mxu0 %v2843
      %2997 = vmatprep.subr.bf16.mxu0 0
      %2998 = vmatpush1.bf16.msra.mxu0 %v2842
      %2999 = vmatprep.subr.bf16.mxu0 0
      %3000 = vmatpush2.bf16.msra.mxu0 0
      %3001 = vmatprep.subr.bf16.mxu0 0
      %3002 = vmatpush2.bf16.msra.mxu0 0
      %3003 = vmatprep.subr.bf16.mxu0 0
      %3004 = vmatpush2.bf16.msra.mxu0 0
      %3005 = vmatprep.subr.bf16.mxu0 0
      %3006 = vmatpush2.bf16.msra.mxu0 0
      %3007 = vmatprep.subr.bf16.mxu0 0
      %3008 = vmatpush2.bf16.msra.mxu0 0
      %3009 = vmatprep.subr.bf16.mxu0 0
      %3010 = vmatpush2.bf16.msra.mxu0 0
      %3011 = vmatprep.subr.bf16.mxu0 0
      %3012 = vmatpush2.bf16.msra.mxu0 0
      %3013 = vmatprep.subr.bf16.mxu0 0
      %3014 = vmatpush2.bf16.msra.mxu0 0
      %3015 = vmatprep.mubr.bf16.mxu0 0
      %3016 = vmatmul.mubr.bf16.gmra.mxu0 %v2863
      %v3017 = vpop.f32.mrf.mxu0
      %v3018 = vadd.f32 %v2921, %v3017
      %v3019 = vpop.f32.mrf.mxu0
      %v3020 = vpop.f32.mrf.mxu0
      %v3021 = vadd.f32 %v2924, %v3020
      %v3022 = vpop.f32.mrf.mxu0
      %3023 = vmatprep.mubr.bf16.mxu0 0
      %3024 = vmatmul.mubr.bf16.gmra.mxu0 %v2866
      %v3025 = vpop.f32.mrf.mxu0
      %v3026 = vadd.f32 %v2929, %v3025
      %v3027 = vpop.f32.mrf.mxu0
      %v3028 = vpop.f32.mrf.mxu0
      %v3029 = vadd.f32 %v2932, %v3028
      %v3030 = vpop.f32.mrf.mxu0
      %3031 = vmatprep.mubr.bf16.mxu0 0
      %3032 = vmatmul.mubr.bf16.gmra.mxu0 %v2869
      %v3033 = vpop.f32.mrf.mxu0
      %v3034 = vadd.f32 %v2937, %v3033
      %v3035 = vpop.f32.mrf.mxu0
      %v3036 = vpop.f32.mrf.mxu0
      %v3037 = vadd.f32 %v2940, %v3036
      %v3038 = vpop.f32.mrf.mxu0
      %3039 = vmatprep.mubr.bf16.mxu0 0
      %3040 = vmatmul.mubr.bf16.gmra.mxu0 %v2872
      %v3041 = vpop.f32.mrf.mxu0
      %v3042 = vadd.f32 %v2945, %v3041
      %v3043 = vpop.f32.mrf.mxu0
      %v3044 = vpop.f32.mrf.mxu0
      %v3045 = vadd.f32 %v2948, %v3044
      %v3046 = vpop.f32.mrf.mxu0
      %3047 = vmatprep.mubr.bf16.mxu0 0
      %3048 = vmatmul.mubr.bf16.gmra.mxu0 %v2875
      %v3049 = vpop.f32.mrf.mxu0
      %v3050 = vadd.f32 %v2953, %v3049
      %v3051 = vpop.f32.mrf.mxu0
      %v3052 = vpop.f32.mrf.mxu0
      %v3053 = vadd.f32 %v2956, %v3052
      %v3054 = vpop.f32.mrf.mxu0
      %3055 = vmatprep.mubr.bf16.mxu0 0
      %3056 = vmatmul.mubr.bf16.gmra.mxu0 %v2878
      %v3057 = vpop.f32.mrf.mxu0
      %v3058 = vadd.f32 %v2961, %v3057
      %v3059 = vpop.f32.mrf.mxu0
      %v3060 = vpop.f32.mrf.mxu0
      %v3061 = vadd.f32 %v2964, %v3060
      %v3062 = vpop.f32.mrf.mxu0
      %3063 = vmatprep.mubr.bf16.mxu0 0
      %3064 = vmatmul.mubr.bf16.gmra.mxu0 %v2881
      %v3065 = vpop.f32.mrf.mxu0
      %v3066 = vadd.f32 %v2969, %v3065
      %v3067 = vpop.f32.mrf.mxu0
      %v3068 = vpop.f32.mrf.mxu0
      %v3069 = vadd.f32 %v2972, %v3068
      %v3070 = vpop.f32.mrf.mxu0
      %3071 = vmatprep.mubr.bf16.mxu0 0
      %3072 = vmatmul.mubr.bf16.gmra.mxu0 %v2884
      %v3073 = vpop.f32.mrf.mxu0
      %v3074 = vadd.f32 %v2977, %v3073
      %v3075 = vpop.f32.mrf.mxu0
      %v3076 = vpop.f32.mrf.mxu0
      %v3077 = vadd.f32 %v2980, %v3076
      %v3078 = vpop.f32.mrf.mxu0
      %3079 = vdwg.mxu0
      %v3080 = vmax.f32 %v3018, 0.0
      %v3081 = vmax.f32 %v3021, 0.0
      %v3082 = vmax.f32 %v3026, 0.0
      %v3083 = vmax.f32 %v3029, 0.0
      %v3084 = vmax.f32 %v3034, 0.0
      %v3085 = vmax.f32 %v3037, 0.0
      %v3086 = vmax.f32 %v3042, 0.0
      %v3087 = vmax.f32 %v3045, 0.0
      %v3088 = vmax.f32 %v3050, 0.0
      %v3089 = vmax.f32 %v3053, 0.0
      %v3090 = vmax.f32 %v3058, 0.0
      %v3091 = vmax.f32 %v3061, 0.0
      %v3092 = vmax.f32 %v3066, 0.0
      %v3093 = vmax.f32 %v3069, 0.0
      %v3094 = vmax.f32 %v3074, 0.0
      %v3095 = vmax.f32 %v3077, 0.0
      %v3096 = vpack.c.bf16 %v3081, %v3080
      %v3097 = vpack.c.bf16 %v3083, %v3082
      %v3098 = vpack.c.bf16 %v3085, %v3084
      %v3099 = vpack.c.bf16 %v3087, %v3086
      %v3100 = vpack.c.bf16 %v3089, %v3088
      %v3101 = vpack.c.bf16 %v3091, %v3090
      %v3102 = vpack.c.bf16 %v3093, %v3092
      %v3103 = vpack.c.bf16 %v3095, %v3094
      %v3104 = vld [vmem:[%s7] sm:$0xf]
      %v3105 = vld [vmem:[%s7 + $0x4] sm:$0xf]
      %v3106 = vld [vmem:[%s7 + $0x8] sm:$0xf]
      %v3107 = vld [vmem:[%s7 + $0xc] sm:$0xf]
      %v3108 = vld [vmem:[%s8] sm:$0x1]
      %v3110 = vlaneseq
      %v3111 = vshrl.u32 %v3110, 7
      %v3112 = vsub.s32 0, %v3111
      %v3113 = vrot.slane %v3108, %v3112
      %v3119 = vunpack.c.l.b16 %v3104
      %v3120 = vunpack.c.l.b16 %v3105
      %v3121 = vunpack.c.l.b16 %v3106
      %v3122 = vunpack.c.l.b16 %v3107
      %v3123 = vpack.c.b16 %v3120, %v3119
      %v3124 = vpack.c.b16 %v3122, %v3121
      %v3128 = vsel %vm671, %v3096, 0
      %v3131 = vsel %vm671, %v3097, 0
      %v3134 = vsel %vm671, %v3098, 0
      %v3137 = vsel %vm671, %v3099, 0
      %v3140 = vsel %vm671, %v3100, 0
      %v3143 = vsel %vm671, %v3101, 0
      %v3146 = vsel %vm671, %v3102, 0
      %v3149 = vsel %vm671, %v3103, 0
      %3151 = vmatprep.subr.bf16.mxu0 0
      %3152 = vmatpush1.bf16.msra.mxu0 0
      %3153 = vmatprep.subr.bf16.mxu0 0
      %3154 = vmatpush1.bf16.msra.mxu0 0
      %3155 = vmatprep.subr.bf16.mxu0 0
      %3156 = vmatpush1.bf16.msra.mxu0 0
      %3157 = vmatprep.subr.bf16.mxu0 0
      %3158 = vmatpush1.bf16.msra.mxu0 0
      %3159 = vmatprep.subr.bf16.mxu0 0
      %3160 = vmatpush1.bf16.msra.mxu0 0
      %3161 = vmatprep.subr.bf16.mxu0 0
      %3162 = vmatpush1.bf16.msra.mxu0 0
      %3163 = vmatprep.subr.bf16.mxu0 0
      %3164 = vmatpush1.bf16.msra.mxu0 %v3124
      %3165 = vmatprep.subr.bf16.mxu0 0
      %3166 = vmatpush1.bf16.msra.mxu0 %v3123
      %3167 = vmatprep.subr.bf16.mxu0 0
      %3168 = vmatpush2.bf16.msra.mxu0 0
      %3169 = vmatprep.subr.bf16.mxu0 0
      %3170 = vmatpush2.bf16.msra.mxu0 0
      %3171 = vmatprep.subr.bf16.mxu0 0
      %3172 = vmatpush2.bf16.msra.mxu0 0
      %3173 = vmatprep.subr.bf16.mxu0 0
      %3174 = vmatpush2.bf16.msra.mxu0 0
      %3175 = vmatprep.subr.bf16.mxu0 0
      %3176 = vmatpush2.bf16.msra.mxu0 0
      %3177 = vmatprep.subr.bf16.mxu0 0
      %3178 = vmatpush2.bf16.msra.mxu0 0
      %3179 = vmatprep.subr.bf16.mxu0 0
      %3180 = vmatpush2.bf16.msra.mxu0 0
      %3181 = vmatprep.subr.bf16.mxu0 0
      %3182 = vmatpush2.bf16.msra.mxu0 0
      %3183 = vmatprep.mubr.bf16.mxu0 0
      %3184 = vmatmul.mubr.bf16.gmra.mxu0 %v3128
      %v3185 = vpop.f32.mrf.mxu0
      %v3186 = vadd.f32 %v3113, %v3185
      %v3187 = vpop.f32.mrf.mxu0
      %v3188 = vpop.f32.mrf.mxu0
      %v3189 = vadd.f32 %v3113, %v3188
      %v3190 = vpop.f32.mrf.mxu0
      %3191 = vmatprep.mubr.bf16.mxu0 0
      %3192 = vmatmul.mubr.bf16.gmra.mxu0 %v3131
      %v3193 = vpop.f32.mrf.mxu0
      %v3194 = vadd.f32 %v3113, %v3193
      %v3195 = vpop.f32.mrf.mxu0
      %v3196 = vpop.f32.mrf.mxu0
      %v3197 = vadd.f32 %v3113, %v3196
      %v3198 = vpop.f32.mrf.mxu0
      %3199 = vmatprep.mubr.bf16.mxu0 0
      %3200 = vmatmul.mubr.bf16.gmra.mxu0 %v3134
      %v3201 = vpop.f32.mrf.mxu0
      %v3202 = vadd.f32 %v3113, %v3201
      %v3203 = vpop.f32.mrf.mxu0
      %v3204 = vpop.f32.mrf.mxu0
      %v3205 = vadd.f32 %v3113, %v3204
      %v3206 = vpop.f32.mrf.mxu0
      %3207 = vmatprep.mubr.bf16.mxu0 0
      %3208 = vmatmul.mubr.bf16.gmra.mxu0 %v3137
      %v3209 = vpop.f32.mrf.mxu0
      %v3210 = vadd.f32 %v3113, %v3209
      %v3211 = vpop.f32.mrf.mxu0
      %v3212 = vpop.f32.mrf.mxu0
      %v3213 = vadd.f32 %v3113, %v3212
      %v3214 = vpop.f32.mrf.mxu0
      %3215 = vmatprep.mubr.bf16.mxu0 0
      %3216 = vmatmul.mubr.bf16.gmra.mxu0 %v3140
      %v3217 = vpop.f32.mrf.mxu0
      %v3218 = vadd.f32 %v3113, %v3217
      %v3219 = vpop.f32.mrf.mxu0
      %v3220 = vpop.f32.mrf.mxu0
      %v3221 = vadd.f32 %v3113, %v3220
      %v3222 = vpop.f32.mrf.mxu0
      %3223 = vmatprep.mubr.bf16.mxu0 0
      %3224 = vmatmul.mubr.bf16.gmra.mxu0 %v3143
      %v3225 = vpop.f32.mrf.mxu0
      %v3226 = vadd.f32 %v3113, %v3225
      %v3227 = vpop.f32.mrf.mxu0
      %v3228 = vpop.f32.mrf.mxu0
      %v3229 = vadd.f32 %v3113, %v3228
      %v3230 = vpop.f32.mrf.mxu0
      %3231 = vmatprep.mubr.bf16.mxu0 0
      %3232 = vmatmul.mubr.bf16.gmra.mxu0 %v3146
      %v3233 = vpop.f32.mrf.mxu0
      %v3234 = vadd.f32 %v3113, %v3233
      %v3235 = vpop.f32.mrf.mxu0
      %v3236 = vpop.f32.mrf.mxu0
      %v3237 = vadd.f32 %v3113, %v3236
      %v3238 = vpop.f32.mrf.mxu0
      %3239 = vmatprep.mubr.bf16.mxu0 0
      %3240 = vmatmul.mubr.bf16.gmra.mxu0 %v3149
      %v3241 = vpop.f32.mrf.mxu0
      %v3242 = vadd.f32 %v3113, %v3241
      %v3243 = vpop.f32.mrf.mxu0
      %v3244 = vpop.f32.mrf.mxu0
      %v3245 = vadd.f32 %v3113, %v3244
      %v3246 = vpop.f32.mrf.mxu0
      %3247 = vdwg.mxu0
      %v3248 = vpack.c.bf16 %v3189, %v3186
      %v3249 = vpack.c.bf16 %v3197, %v3194
      %v3250 = vpack.c.bf16 %v3205, %v3202
      %v3251 = vpack.c.bf16 %v3213, %v3210
      %v3252 = vpack.c.bf16 %v3221, %v3218
      %v3253 = vpack.c.bf16 %v3229, %v3226
      %v3254 = vpack.c.bf16 %v3237, %v3234
      %v3255 = vpack.c.bf16 %v3245, %v3242
      %v3264 = vunpack.c.l.b16 %v3248
      %v3265 = vunpack.c.h.b16 %v3248
      %v3266 = vunpack.c.l.b16 %v3249
      %v3267 = vunpack.c.h.b16 %v3249
      %v3268 = vunpack.c.l.b16 %v3250
      %v3269 = vunpack.c.h.b16 %v3250
      %v3270 = vunpack.c.l.b16 %v3251
      %v3271 = vunpack.c.h.b16 %v3251
      %v3272 = vunpack.c.l.b16 %v3252
      %v3273 = vunpack.c.h.b16 %v3252
      %v3274 = vunpack.c.l.b16 %v3253
      %v3275 = vunpack.c.h.b16 %v3253
      %v3276 = vunpack.c.l.b16 %v3254
      %v3277 = vunpack.c.h.b16 %v3254
      %v3278 = vunpack.c.l.b16 %v3255
      %v3279 = vunpack.c.h.b16 %v3255
      %v3280 = vpack.c.b16 %v3264, %v3264
      %v3281 = vpack.c.b16 %v3265, %v3265
      %v3282 = vpack.c.b16 %v3266, %v3266
      %v3283 = vpack.c.b16 %v3267, %v3267
      %v3284 = vpack.c.b16 %v3268, %v3268
      %v3285 = vpack.c.b16 %v3269, %v3269
      %v3286 = vpack.c.b16 %v3270, %v3270
      %v3287 = vpack.c.b16 %v3271, %v3271
      %v3288 = vpack.c.b16 %v3272, %v3272
      %v3289 = vpack.c.b16 %v3273, %v3273
      %v3290 = vpack.c.b16 %v3274, %v3274
      %v3291 = vpack.c.b16 %v3275, %v3275
      %v3292 = vpack.c.b16 %v3276, %v3276
      %v3293 = vpack.c.b16 %v3277, %v3277
      %v3294 = vpack.c.b16 %v3278, %v3278
      %v3295 = vpack.c.b16 %v3279, %v3279
      %3312 = vst [vmem:[%s368] sm:$0xf] %v3280
      %3313 = vst [vmem:[%s368 + $0x4] sm:$0xf] %v3281
      %3314 = vst [vmem:[%s368 + $0x8] sm:$0xf] %v3282
      %3315 = vst [vmem:[%s368 + $0xc] sm:$0xf] %v3283
      %3316 = vst [vmem:[%s368 + $0x10] sm:$0xf] %v3284
      %3317 = vst [vmem:[%s368 + $0x14] sm:$0xf] %v3285
      %3318 = vst [vmem:[%s368 + $0x18] sm:$0xf] %v3286
      %3319 = vst [vmem:[%s368 + $0x1c] sm:$0xf] %v3287
      %3320 = vst [vmem:[%s368 + $0x20] sm:$0xf] %v3288
      %3321 = vst [vmem:[%s368 + $0x24] sm:$0xf] %v3289
      %3322 = vst [vmem:[%s368 + $0x28] sm:$0xf] %v3290
      %3323 = vst [vmem:[%s368 + $0x2c] sm:$0xf] %v3291
      %3324 = vst [vmem:[%s368 + $0x30] sm:$0xf] %v3292
      %3325 = vst [vmem:[%s368 + $0x34] sm:$0xf] %v3293
      %3326 = vst [vmem:[%s368 + $0x38] sm:$0xf] %v3294
      %3327 = vst [vmem:[%s368 + $0x3c] sm:$0xf] %v3295
      %s3328 = smul.u32 16, %s25
      %p3329 = scmp.lt.s32.totalorder %s24, 1
      %s3330 = scalar_select %p3329, %s24, 1
      %p3331 = scmp.lt.s32.totalorder %s3328, 31
      %s3332 = scalar_select %p3331, %s3328, 31
      %s3333 = smul.addr %s3330, 32
      %s3334 = sadd.s32 %s3332, %s3333
      %s3335 = smul.addr %s3334, 4
      %s3336 = scalar_lea.vmem %s9, %s3335
      // Predicated region
      $region65: #{cascade_ssd_forward.1} parent=55 // pred_check
        %p3337 = pneg %p248
      $region66: #{cascade_ssd_forward.1} parent=55 // pred_check_branch
        %3339 = sbr.rel (%p3337) target = $region68
      $region67: #{cascade_ssd_forward.1} parent=55 // pred_region
        %s3340 = smul.u32 16, %s25
      $region68: #{cascade_ssd_forward.1} parent=55 // pred_fallthru
        _
    $region56: #{cascade_ssd_forward.1} parent=5 // pred_fallthru
      _
    %p3341 = scmp.le.s32.totalorder 2, %s15
    // Predicated region
    $region69: #{cascade_ssd_forward.1} parent=5 // pred_check
      %p3342 = pneg %p3341
    $region70: #{cascade_ssd_forward.1} parent=5 // pred_check_branch
      %3344 = sbr.rel (%p3342) target = $region72
    $region71: #{cascade_ssd_forward.1} parent=5 // pred_region
      %s3345 = ssub.s32 %s15, 2
      // Predicated region
      $region73: #{cascade_ssd_forward.1} parent=71 // pred_check
        %p3346 = pneg %p254
      $region74: #{cascade_ssd_forward.1} parent=71 // pred_check_branch
        %3348 = sbr.rel (%p3346) target = $region76
      $region75: #{cascade_ssd_forward.1} parent=71 // pred_region
        %s3349 = smul.u32 16, %s27
        %p3350 = scmp.lt.s32.totalorder %s26, 1
        %s3351 = scalar_select %p3350, %s26, 1
        %p3352 = scmp.lt.s32.totalorder %s3349, 31
        %s3353 = scalar_select %p3352, %s3349, 31
        %s3354 = smul.addr %s3351, 32
        %s3355 = sadd.s32 %s3353, %s3354
        %s3356 = smul.addr %s3355, 4
        %s3357 = scalar_lea.vmem %s9, %s3356
      $region76: #{cascade_ssd_forward.1} parent=71 // pred_fallthru
        _
    $region72: #{cascade_ssd_forward.1} parent=5 // pred_fallthru
      _
  $region6: #{cascade_ssd_forward.1} parent=0 // loop_footer
    %s19 = sadd.s32 1, %s15
  $region7: #{cascade_ssd_forward.1} parent=0 // loop_footer_branch
    %14 = sbr.rel target = $region3
  $region8: #{cascade_ssd_forward.1} parent=0 // loop_exit
    _

</llo_original>
